<compile_context>
chip_gen: v6e
topology: v6e:2x2x1
jax: 0.10.0
libtpu: 0.0.40
codegen_flags: <defaults>
</compile_context>

<pallas_src>
import functools

import jax
import jax.numpy as jnp
import numpy as np
from jax.experimental import pallas as pl
from jax.experimental.pallas import tpu as pltpu

LN_EPS = 1e-5


def _layer_norm(y, gamma, beta):
    mu = jnp.mean(y, axis=-1, keepdims=True)
    var = jnp.mean(jnp.square(y - mu), axis=-1, keepdims=True)
    return (y - mu) * jax.lax.rsqrt(var + LN_EPS) * gamma + beta


def _gelu(y):
    # TODO(synk): PyTorch nn.GELU defaults to the exact erf form; erf has no clean Mosaic
    # lowering, so the tanh approximation is used here (and in the reference).
    return jax.nn.gelu(y, approximate=True)


# ---------------------------------------------------------------------------
# Kernel A (grid over B): fused kv projection (head-major k/v) + 2x bilinear
# upsample already projected by skip_atten_linear, emitted phase-blocked.
# ---------------------------------------------------------------------------
def prep_kernel(x_ref, colw_ref, weff_ref, beff_ref, wsal_ref, bsal_ref,
                k_ref, v_ref, up_ref, *, num_heads, W):
    xt = x_ref[0]                                   # (HW, D) bf16 -- single HBM read of x
    HW = xt.shape[0]
    C = wsal_ref.shape[1]
    d = C // num_heads

    # kv_reduction folded into proj_kv: one wide matmul (N = 2C = D), bf16 MXU, f32 acc.
    kv = (jnp.dot(xt, weff_ref[...], preferred_element_type=jnp.float32)
          + beff_ref[...])                          # (HW, 2C) f32
    for h in range(num_heads):                      # head-major layout for kernel B
        k_ref[0, h] = kv[:, h * d:(h + 1) * d].astype(k_ref.dtype)
        v_ref[0, h] = kv[:, C + h * d:C + (h + 1) * d].astype(v_ref.dtype)

    # --- 2x bilinear upsample (align_corners=False) in token space, f32 lerp math ---
    xf = xt.astype(jnp.float32)                     # (HW, D)
    # row shift (token shift by W) with edge clamp via sublane concats
    r_prev = jnp.concatenate([xf[:W], xf[:-W]], axis=0)
    r_next = jnp.concatenate([xf[W:], xf[-W:]], axis=0)
    row0 = 0.25 * r_prev + 0.75 * xf                # output rows 2r
    row1 = 0.75 * xf + 0.25 * r_next                # output rows 2r + 1
    # column shift (token shift by 1) via XLU roll; the per-row edge clamp is folded into
    # the precomputed (HW, 1) blend weights -> plain VPU multiply-adds, no masked selects.
    w_prev, w_cur0 = colw_ref[0], colw_ref[1]
    w_next, w_cur1 = colw_ref[2], colw_ref[3]
    wsal = wsal_ref[...]
    for pr, rp in enumerate((row0, row1)):
        c_prev = pltpu.roll(rp, shift=1, axis=0)
        c_next = pltpu.roll(rp, shift=HW - 1, axis=0)
        ph0 = (w_prev * c_prev + w_cur0 * rp).astype(wsal.dtype)      # output cols 2c
        ph1 = (w_cur1 * rp + w_next * c_next).astype(wsal.dtype)      # output cols 2c + 1
        up_ref[0, 2 * pr + 0] = (jnp.dot(ph0, wsal, preferred_element_type=jnp.float32)
                                 + bsal_ref[...]).astype(up_ref.dtype)
        up_ref[0, 2 * pr + 1] = (jnp.dot(ph1, wsal, preferred_element_type=jnp.float32)
                                 + bsal_ref[...]).astype(up_ref.dtype)
    # TODO(synk): for v7x-sized images, tile this kernel over row blocks (1-row halo) instead
    # of whole-image blocks to bound VMEM under the 64 MiB physical limit.


# ---------------------------------------------------------------------------
# Kernel B (grid over (B, token tiles)): cross-attention + residuals + LN/MLP/LN, fused.
# ---------------------------------------------------------------------------
def attn_ffn_kernel(skip_ref, up_ref, k_ref, v_ref,
                    wq_ref, bq_ref, wap_ref, bap_ref,
                    g1_ref, be1_ref, w1_ref, b1_ref, w2_ref, b2_ref, g2_ref, be2_ref,
                    o_ref, *, num_heads):
    skip = skip_ref[0]                               # (TL, C) bf16
    TL, C = skip.shape

    attn = jnp.zeros((TL, C), jnp.float32)
    for h in range(num_heads):                       # heads indexed on leading axes only
        q_h = (jnp.dot(skip, wq_ref[h], preferred_element_type=jnp.float32)
               + bq_ref[h]).astype(skip.dtype)       # (TL, d); scale pre-folded into wq/bq
        k_h = k_ref[0, h]                            # (HW, d) bf16
        v_h = v_ref[0, h]                            # (HW, d) bf16
        s = jax.lax.dot_general(q_h, k_h, (((1,), (1,)), ((), ())),
                                preferred_element_type=jnp.float32)   # (TL, HW) f32
        s = s - jnp.max(s, axis=-1, keepdims=True)
        p = jnp.exp(s)
        p = p * pl.reciprocal(jnp.sum(p, axis=-1, keepdims=True), approx=True)
        pv = jnp.dot(p.astype(v_h.dtype), v_h, preferred_element_type=jnp.float32)  # (TL, d)
        attn = attn + jnp.dot(pv.astype(wap_ref.dtype), wap_ref[h],
                              preferred_element_type=jnp.float32)     # += per-head attn_proj

    y = attn + bap_ref[...] + up_ref[0].astype(jnp.float32)           # drop_path = identity
    yn = _layer_norm(y, g1_ref[...], be1_ref[...])
    hid = _gelu(jnp.dot(yn.astype(w1_ref.dtype), w1_ref[...],
                        preferred_element_type=jnp.float32) + b1_ref[...])
    ffn = jnp.dot(hid.astype(w2_ref.dtype), w2_ref[...],
                  preferred_element_type=jnp.float32) + b2_ref[...]
    y = y + ffn
    y = _layer_norm(y, g2_ref[...], be2_ref[...])
    o_ref[0] = y.astype(o_ref.dtype)


# ---------------------------------------------------------------------------
# Wrapper
# ---------------------------------------------------------------------------
def _pick_token_tile(L, cap=512):
    for t in range(min(cap, L), 7, -1):
        if L % t == 0 and t % 8 == 0:
            return t
    return L                                          # tiny / awkward L: single tile


def _vmem_limit(blocks):
    nbytes = sum(int(np.prod(s)) * jnp.dtype(dt).itemsize for s, dt in blocks)
    est = 4 * nbytes + (8 << 20)                      # double-buffering + relayout/spill headroom
    return int(min(max(est, 16 << 20), 64 << 20))


def nolocal_expand(x, skip_x, params, num_heads):
    """x: (B, H, W, D), skip_x: (B, 2H, 2W, D//2) -> (B, 2H, 2W, D//2)."""
    B, H, W, D = x.shape
    Bs, H2, W2, C = skip_x.shape
    assert Bs == B and C == D // 2 and H2 == 2 * H and W2 == 2 * W and C % num_heads == 0
    HW, L = H * W, H2 * W2
    nh = num_heads
    d = C // nh
    scale = float(d) ** -0.5
    f32, bf16 = jnp.float32, jnp.bfloat16

    # ---- offline weight prep (f32 math; bf16 MXU operands; biases / LN params stay f32) ----
    w_red = jnp.asarray(params["w_red"], f32)                      # (D, C)
    w_kv = jnp.asarray(params["w_kv"], f32)                        # (C, 2C)
    b_red = jnp.asarray(params["b_red"], f32)                      # (C,)
    b_kv = jnp.asarray(params["b_kv"], f32)                        # (2C,)
    w_eff = (w_red @ w_kv).astype(bf16)                            # (D, 2C): kv_reduction ∘ proj_kv
    b_eff = (b_red @ w_kv + b_kv).reshape(1, 2 * C)                # f32

    w_q = jnp.asarray(params["w_q"], f32) * scale                  # attention scale folded in
    b_q = jnp.asarray(params["b_q"], f32) * scale
    w_q_h = w_q.reshape(C, nh, d).transpose(1, 0, 2).astype(bf16)  # (nh, C, d) head-major
    b_q_h = b_q.reshape(nh, 1, d)                                  # (nh, 1, d) f32
    w_ap_h = jnp.asarray(params["w_ap"], f32).reshape(nh, d, C).astype(bf16)
    b_ap = jnp.asarray(params["b_ap"], f32).reshape(1, C)
    w_sal = jnp.asarray(params["w_sal"], f32).astype(bf16)         # (D, C)
    b_sal = jnp.asarray(params["b_sal"], f32).reshape(1, C)
    w1 = jnp.asarray(params["w1"], f32).astype(bf16)               # (C, 4C)
    b1 = jnp.asarray(params["b1"], f32).reshape(1, 4 * C)
    w2 = jnp.asarray(params["w2"], f32).astype(bf16)               # (4C, C)
    b2 = jnp.asarray(params["b2"], f32).reshape(1, C)
    g1 = jnp.asarray(params["g1"], f32).reshape(1, C)
    be1 = jnp.asarray(params["be1"], f32).reshape(1, C)
    g2 = jnp.asarray(params["g2"], f32).reshape(1, C)
    be2 = jnp.asarray(params["be2"], f32).reshape(1, C)

    # Column-edge blend weights for the 2x bilinear upsample (clamp folded into the weights).
    col = np.arange(HW) % W
    colw = np.stack([np.where(col == 0, 0.0, 0.25),        # weight of col c-1 (even out col)
                     np.where(col == 0, 1.0, 0.75),        # weight of col c   (even out col)
                     np.where(col == W - 1, 0.0, 0.25),    # weight of col c+1 (odd out col)
                     np.where(col == W - 1, 1.0, 0.75)],   # weight of col c   (odd out col)
                    axis=0).astype(np.float32)[..., None]  # (4, HW, 1)
    colw = jnp.asarray(colw)

    x_tok = jnp.asarray(x).reshape(B, HW, D).astype(bf16)
    skip_tok = jnp.asarray(skip_x).reshape(B, L, C).astype(bf16)

    # ---------------- kernel A: k/v (head-major) + projected phase-blocked upsample -------
    blocks_a = [((1, HW, D), bf16), ((4, HW, 1), f32), ((D, 2 * C), bf16), ((1, 2 * C), f32),
                ((D, C), bf16), ((1, C), f32),
                ((1, nh, HW, d), bf16), ((1, nh, HW, d), bf16), ((1, 4, HW, C), bf16)]
    kern_a = functools.partial(prep_kernel, num_heads=nh, W=W)
    k, v, up_pb = pl.pallas_call(
        kern_a,
        out_shape=(jax.ShapeDtypeStruct((B, nh, HW, d), bf16),
                   jax.ShapeDtypeStruct((B, nh, HW, d), bf16),
                   jax.ShapeDtypeStruct((B, 4, HW, C), bf16)),
        grid=(B,),
        in_specs=[
            pl.BlockSpec((1, HW, D), lambda b: (b, 0, 0)),
            pl.BlockSpec((4, HW, 1), lambda b: (0, 0, 0)),
            pl.BlockSpec((D, 2 * C), lambda b: (0, 0)),
            pl.BlockSpec((1, 2 * C), lambda b: (0, 0)),
            pl.BlockSpec((D, C), lambda b: (0, 0)),
            pl.BlockSpec((1, C), lambda b: (0, 0)),
        ],
        out_specs=(
            pl.BlockSpec((1, nh, HW, d), lambda b: (b, 0, 0, 0)),
            pl.BlockSpec((1, nh, HW, d), lambda b: (b, 0, 0, 0)),
            pl.BlockSpec((1, 4, HW, C), lambda b: (b, 0, 0, 0)),
        ),
        compiler_params=pltpu.CompilerParams(
            dimension_semantics=("parallel",),
            vmem_limit_bytes=_vmem_limit(blocks_a)),
    )(x_tok, colw, w_eff, b_eff, w_sal, b_sal)

    # Phase-blocked -> token-major reorder: small C-wide bf16 tensor, layout only (no math).
    up = (up_pb.reshape(B, 2, 2, H, W, C)
                .transpose(0, 3, 1, 4, 2, 5)
                .reshape(B, L, C))

    # ---------------- kernel B: fused attention + residuals + LN/MLP/LN --------------------
    TL = _pick_token_tile(L)
    NT = L // TL
    blocks_b = [((1, TL, C), bf16), ((1, TL, C), bf16),
                ((1, nh, HW, d), bf16), ((1, nh, HW, d), bf16),
                ((nh, C, d), bf16), ((nh, 1, d), f32), ((nh, d, C), bf16), ((1, C), f32),
                ((1, C), f32), ((1, C), f32), ((C, 4 * C), bf16), ((1, 4 * C), f32),
                ((4 * C, C), bf16), ((1, C), f32), ((1, C), f32), ((1, C), f32),
                ((1, TL, C), f32), ((TL, HW), f32)]      # last entry ~ per-head score headroom
    kern_b = functools.partial(attn_ffn_kernel, num_heads=nh)
    const2 = lambda b, t: (0, 0)
    const3 = lambda b, t: (0, 0, 0)

    out_tok = pl.pallas_call(
        kern_b,
        out_shape=jax.ShapeDtypeStruct((B, L, C), f32),
        grid=(B, NT),
        in_specs=[
            pl.BlockSpec((1, TL, C), lambda b, t: (b, t, 0)),          # skip tokens (queries)
            pl.BlockSpec((1, TL, C), lambda b, t: (b, t, 0)),          # upsampled + projected x
            pl.BlockSpec((1, nh, HW, d), lambda b, t: (b, 0, 0, 0)),   # k (head-major)
            pl.BlockSpec((1, nh, HW, d), lambda b, t: (b, 0, 0, 0)),   # v (head-major)
            pl.BlockSpec((nh, C, d), const3),                          # w_q (scale folded)
            pl.BlockSpec((nh, 1, d), const3),                          # b_q (scale folded)
            pl.BlockSpec((nh, d, C), const3),                          # w_attn_proj (per head)
            pl.BlockSpec((1, C), const2),                              # b_attn_proj
            pl.BlockSpec((1, C), const2),                              # attn_norm gamma
            pl.BlockSpec((1, C), const2),                              # attn_norm beta
            pl.BlockSpec((C, 4 * C), const2),                          # mlp fc1 W
            pl.BlockSpec((1, 4 * C), const2),                          # mlp fc1 b
            pl.BlockSpec((4 * C, C), const2),                          # mlp fc2 W
            pl.BlockSpec((1, C), const2),                              # mlp fc2 b
            pl.BlockSpec((1, C), const2),                              # ffn_norm gamma
            pl.BlockSpec((1, C), const2),                              # ffn_norm beta
        ],
        out_specs=pl.BlockSpec((1, TL, C), lambda b, t: (b, t, 0)),
        compiler_params=pltpu.CompilerParams(
            dimension_semantics=("parallel", "parallel"),
            vmem_limit_bytes=_vmem_limit(blocks_b)),
    )(skip_tok, up, k, v, w_q_h, b_q_h, w_ap_h, b_ap,
      g1, be1, w1, b1, w2, b2, g2, be2)

    # NOTE: the PyTorch forward also computes outffn(cat([x, skip_x])) but discards it.
    return out_tok.reshape(B, 2 * H, 2 * W, C)


# ---------------------------------------------------------------------------
# Pure-JAX reference mirroring the PyTorch forward (eval mode, f32 throughout).
# ---------------------------------------------------------------------------
def _bilinear_upsample2x_ref(img):
    """(B, H, W, Ch) -> (B, 2H, 2W, Ch); torch bilinear, align_corners=False."""
    B, H, W, Ch = img.shape

    def grid_1d(n):
        src = (jnp.arange(2 * n, dtype=jnp.float32) + 0.5) / 2.0 - 0.5
        src = jnp.maximum(src, 0.0)
        lo = jnp.floor(src).astype(jnp.int32)
        hi = jnp.minimum(lo + 1, n - 1)
        frac = src - lo.astype(jnp.float32)
        return lo, hi, frac

    lo_h, hi_h, fh = grid_1d(H)
    lo_w, hi_w, fw = grid_1d(W)
    rows = (img[:, lo_h] * (1.0 - fh)[None, :, None, None]
            + img[:, hi_h] * fh[None, :, None, None])
    out = (rows[:, :, lo_w] * (1.0 - fw)[None, None, :, None]
           + rows[:, :, hi_w] * fw[None, None, :, None])
    return out


def nolocal_expand_ref(x, skip_x, p, num_heads):
    B, H, W, D = x.shape
    x_t = x.reshape(B, H * W, D)
    b, h, w, c = skip_x.shape
    skip_t = skip_x.reshape(b, h * w, c)
    skip_attn = x_t

    xr = x_t @ p["w_red"] + p["b_red"]                       # kv_reduction
    Bx, L, C = xr.shape
    d = C // num_heads
    scale = d ** (-0.5)

    q = (skip_t @ p["w_q"] + p["b_q"]).reshape(b, h * w, 1, num_heads, d)
    q = jnp.transpose(q, (2, 0, 3, 1, 4))[0]                 # (b, nh, l, d)
    kv = (xr @ p["w_kv"] + p["b_kv"]).reshape(Bx, L, 2, num_heads, d)
    kv = jnp.transpose(kv, (2, 0, 3, 1, 4))                  # (2, B, nh, L, d)
    k, v = kv[0], kv[1]

    attn = jax.nn.softmax((q * scale) @ jnp.swapaxes(k, -2, -1), axis=-1)
    xa = jnp.transpose(attn @ v, (0, 2, 1, 3)).reshape(Bx, h * w, C)
    xa = xa @ p["w_ap"] + p["b_ap"]

    sk = _bilinear_upsample2x_ref(skip_attn.reshape(B, H, W, D)).reshape(B, 4 * H * W, D)
    sk = sk @ p["w_sal"] + p["b_sal"]

    y = xa + sk
    yn = _layer_norm(y, p["g1"], p["be1"])
    ffn = _gelu(yn @ p["w1"] + p["b1"]) @ p["w2"] + p["b2"]
    y = y + ffn
    y = _layer_norm(y, p["g2"], p["be2"])
    return y.reshape(B, 2 * H, 2 * W, C)


if __name__ == "__main__":
    root = jax.random.PRNGKey(0)
    keys = iter(jax.random.split(root, 32))

    B, H, W = 2, 8, 8
    EMB = 32                 # emd_dims
    C = EMB // 2             # 16
    NUM_HEADS = 2

    def nrm(shape, s=1.0):
        return s * jax.random.normal(next(keys), shape, dtype=jnp.float32)

    x = nrm((B, H, W, EMB))
    skip_x = nrm((B, 2 * H, 2 * W, C))

    def linear(fan_in, fan_out):
        return nrm((fan_in, fan_out), 1.0 / np.sqrt(fan_in)), nrm((fan_out,), 0.02)

    w_red, b_red = linear(EMB, C)
    w_kv, b_kv = linear(C, EMB)
    w_q, b_q = linear(C, C)
    w_ap, b_ap = linear(C, C)
    w_sal, b_sal = linear(EMB, C)
    w1, b1 = linear(C, 4 * C)
    w2, b2 = linear(4 * C, C)

    params = dict(
        w_red=w_red, b_red=b_red, w_kv=w_kv, b_kv=b_kv,
        w_q=w_q, b_q=b_q, w_ap=w_ap, b_ap=b_ap, w_sal=w_sal, b_sal=b_sal,
        g1=1.0 + nrm((C,), 0.05), be1=nrm((C,), 0.05),
        w1=w1, b1=b1, w2=w2, b2=b2,
        g2=1.0 + nrm((C,), 0.05), be2=nrm((C,), 0.05),
    )

    out = nolocal_expand(x, skip_x, params, NUM_HEADS)
    out = jax.block_until_ready(out)

    ref = nolocal_expand_ref(x, skip_x, params, NUM_HEADS)
    # Kernel streams / MXU operands run in bf16 (f32 accumulation), reference is pure f32,
    # so the tolerance reflects bf16 quantization of inputs, weights and intermediates.
    np.testing.assert_allclose(np.asarray(out), np.asarray(ref), rtol=5e-2, atol=5e-2)

    print("KERNEL_OK")
</pallas_src>

<mosaic_0001>
module attributes {stable_mosaic.version = 11 : i64} {
  func.func @prep_kernel(%arg0: i32, %arg1: memref<1x64x32xbf16, #tpu.memory_space<vmem>>, %arg2: memref<4x64x1xf32, #tpu.memory_space<vmem>>, %arg3: memref<32x32xbf16, #tpu.memory_space<vmem>>, %arg4: memref<1x32xf32, #tpu.memory_space<vmem>>, %arg5: memref<32x16xbf16, #tpu.memory_space<vmem>>, %arg6: memref<1x16xf32, #tpu.memory_space<vmem>>, %arg7: memref<1x2x64x8xbf16, #tpu.memory_space<vmem>>, %arg8: memref<1x2x64x8xbf16, #tpu.memory_space<vmem>>, %arg9: memref<1x4x64x16xbf16, #tpu.memory_space<vmem>>) attributes {dimension_semantics = [#tpu.dimension_semantics<parallel>], iteration_bounds = array<i64: 2>, scalar_prefetch = 0 : i64, scratch_operands = 0 : i64, tpu.core_type = #tpu.core_type<tc>, window_params = [{transform_indices = @transform_0, window_bounds = array<i64: 1, 64, 32>}, {pipeline_mode = #tpu.pipeline_mode<synchronous>, transform_indices = @transform_1, window_bounds = array<i64: 4, 64, 1>}, {pipeline_mode = #tpu.pipeline_mode<synchronous>, transform_indices = @transform_2, window_bounds = array<i64: 32, 32>}, {pipeline_mode = #tpu.pipeline_mode<synchronous>, transform_indices = @transform_3, window_bounds = array<i64: 1, 32>}, {pipeline_mode = #tpu.pipeline_mode<synchronous>, transform_indices = @transform_4, window_bounds = array<i64: 32, 16>}, {pipeline_mode = #tpu.pipeline_mode<synchronous>, transform_indices = @transform_5, window_bounds = array<i64: 1, 16>}, {transform_indices = @transform_6, window_bounds = array<i64: 1, 2, 64, 8>}, {transform_indices = @transform_7, window_bounds = array<i64: 1, 2, 64, 8>}, {transform_indices = @transform_8, window_bounds = array<i64: 1, 4, 64, 16>}]} {
    %c0 = arith.constant 0 : index
    %c0_0 = arith.constant 0 : index
    %c0_1 = arith.constant 0 : index
    %0 = vector.load %arg1[%c0, %c0_0, %c0_1] : memref<1x64x32xbf16, #tpu.memory_space<vmem>>, vector<1x64x32xbf16>
    %1 = vector.shape_cast %0 : vector<1x64x32xbf16> to vector<64x32xbf16>
    %c0_2 = arith.constant 0 : index
    %c0_3 = arith.constant 0 : index
    %2 = vector.load %arg3[%c0_2, %c0_3] : memref<32x32xbf16, #tpu.memory_space<vmem>>, vector<32x32xbf16>
    %cst = arith.constant dense<0.000000e+00> : vector<64x32xf32>
    %3 = tpu.matmul %1, %2, %cst {dimension_numbers = #tpu.dot_dimension_numbers<[1], [0], [0], [1], [0, 0, 1, 1], [], []>} : vector<64x32xbf16>, vector<32x32xbf16>, vector<64x32xf32> -> vector<64x32xf32>
    %c0_4 = arith.constant 0 : index
    %c0_5 = arith.constant 0 : index
    %4 = vector.load %arg4[%c0_4, %c0_5] : memref<1x32xf32, #tpu.memory_space<vmem>>, vector<1x32xf32>
    %5 = vector.broadcast %4 : vector<1x32xf32> to vector<64x32xf32>
    %6 = arith.addf %3, %5 : vector<64x32xf32>
    %7 = vector.extract_strided_slice %6 {offsets = [0, 0], sizes = [64, 8], strides = [1, 1]} : vector<64x32xf32> to vector<64x8xf32>
    %8 = arith.truncf %7 : vector<64x8xf32> to vector<64x8xbf16>
    %c0_6 = arith.constant 0 : index
    %c0_7 = arith.constant 0 : index
    %c0_8 = arith.constant 0 : index
    %c0_9 = arith.constant 0 : index
    %9 = vector.load %arg7[%c0_6, %c0_7, %c0_8, %c0_9] : memref<1x2x64x8xbf16, #tpu.memory_space<vmem>>, vector<1x1x64x8xbf16>
    %10 = vector.shape_cast %9 : vector<1x1x64x8xbf16> to vector<64x8xbf16>
    %11 = vector.shape_cast %8 : vector<64x8xbf16> to vector<1x1x64x8xbf16>
    tpu.vector_store %arg7[%c0_6, %c0_7, %c0_8, %c0_9], %11 {strides = array<i32>} : memref<1x2x64x8xbf16, #tpu.memory_space<vmem>>, vector<1x1x64x8xbf16>,
    %12 = vector.extract_strided_slice %6 {offsets = [0, 16], sizes = [64, 8], strides = [1, 1]} : vector<64x32xf32> to vector<64x8xf32>
    %13 = arith.truncf %12 : vector<64x8xf32> to vector<64x8xbf16>
    %c0_10 = arith.constant 0 : index
    %c0_11 = arith.constant 0 : index
    %c0_12 = arith.constant 0 : index
    %c0_13 = arith.constant 0 : index
    %14 = vector.load %arg8[%c0_10, %c0_11, %c0_12, %c0_13] : memref<1x2x64x8xbf16, #tpu.memory_space<vmem>>, vector<1x1x64x8xbf16>
    %15 = vector.shape_cast %14 : vector<1x1x64x8xbf16> to vector<64x8xbf16>
    %16 = vector.shape_cast %13 : vector<64x8xbf16> to vector<1x1x64x8xbf16>
    tpu.vector_store %arg8[%c0_10, %c0_11, %c0_12, %c0_13], %16 {strides = array<i32>} : memref<1x2x64x8xbf16, #tpu.memory_space<vmem>>, vector<1x1x64x8xbf16>,
    %17 = vector.extract_strided_slice %6 {offsets = [0, 8], sizes = [64, 8], strides = [1, 1]} : vector<64x32xf32> to vector<64x8xf32>
    %18 = arith.truncf %17 : vector<64x8xf32> to vector<64x8xbf16>
    %c0_14 = arith.constant 0 : index
    %c1 = arith.constant 1 : index
    %c0_15 = arith.constant 0 : index
    %c0_16 = arith.constant 0 : index
    %19 = vector.load %arg7[%c0_14, %c1, %c0_15, %c0_16] : memref<1x2x64x8xbf16, #tpu.memory_space<vmem>>, vector<1x1x64x8xbf16>
    %20 = vector.shape_cast %19 : vector<1x1x64x8xbf16> to vector<64x8xbf16>
    %21 = vector.shape_cast %18 : vector<64x8xbf16> to vector<1x1x64x8xbf16>
    tpu.vector_store %arg7[%c0_14, %c1, %c0_15, %c0_16], %21 {strides = array<i32>} : memref<1x2x64x8xbf16, #tpu.memory_space<vmem>>, vector<1x1x64x8xbf16>,
    %22 = vector.extract_strided_slice %6 {offsets = [0, 24], sizes = [64, 8], strides = [1, 1]} : vector<64x32xf32> to vector<64x8xf32>
    %23 = arith.truncf %22 : vector<64x8xf32> to vector<64x8xbf16>
    %c0_17 = arith.constant 0 : index
    %c1_18 = arith.constant 1 : index
    %c0_19 = arith.constant 0 : index
    %c0_20 = arith.constant 0 : index
    %24 = vector.load %arg8[%c0_17, %c1_18, %c0_19, %c0_20] : memref<1x2x64x8xbf16, #tpu.memory_space<vmem>>, vector<1x1x64x8xbf16>
    %25 = vector.shape_cast %24 : vector<1x1x64x8xbf16> to vector<64x8xbf16>
    %26 = vector.shape_cast %23 : vector<64x8xbf16> to vector<1x1x64x8xbf16>
    tpu.vector_store %arg8[%c0_17, %c1_18, %c0_19, %c0_20], %26 {strides = array<i32>} : memref<1x2x64x8xbf16, #tpu.memory_space<vmem>>, vector<1x1x64x8xbf16>,
    %27 = arith.extf %1 : vector<64x32xbf16> to vector<64x32xf32>
    %28 = vector.extract_strided_slice %27 {offsets = [0, 0], sizes = [8, 32], strides = [1, 1]} : vector<64x32xf32> to vector<8x32xf32>
    %29 = vector.extract_strided_slice %27 {offsets = [0, 0], sizes = [56, 32], strides = [1, 1]} : vector<64x32xf32> to vector<56x32xf32>
    %30 = tpu.concatenate %28, %29 in 0 : vector<8x32xf32>, vector<56x32xf32> -> vector<64x32xf32>
    %31 = vector.extract_strided_slice %27 {offsets = [8, 0], sizes = [56, 32], strides = [1, 1]} : vector<64x32xf32> to vector<56x32xf32>
    %32 = vector.extract_strided_slice %27 {offsets = [56, 0], sizes = [8, 32], strides = [1, 1]} : vector<64x32xf32> to vector<8x32xf32>
    %33 = tpu.concatenate %31, %32 in 0 : vector<56x32xf32>, vector<8x32xf32> -> vector<64x32xf32>
    %cst_21 = arith.constant 2.500000e-01 : f32
    %34 = vector.broadcast %cst_21 : f32 to vector<64x32xf32>
    %35 = arith.mulf %34, %30 : vector<64x32xf32>
    %cst_22 = arith.constant 7.500000e-01 : f32
    %36 = vector.broadcast %cst_22 : f32 to vector<64x32xf32>
    %37 = arith.mulf %36, %27 : vector<64x32xf32>
    %38 = arith.addf %35, %37 : vector<64x32xf32>
    %cst_23 = arith.constant 7.500000e-01 : f32
    %39 = vector.broadcast %cst_23 : f32 to vector<64x32xf32>
    %40 = arith.mulf %39, %27 : vector<64x32xf32>
    %cst_24 = arith.constant 2.500000e-01 : f32
    %41 = vector.broadcast %cst_24 : f32 to vector<64x32xf32>
    %42 = arith.mulf %41, %33 : vector<64x32xf32>
    %43 = arith.addf %40, %42 : vector<64x32xf32>
    %c0_25 = arith.constant 0 : index
    %c0_26 = arith.constant 0 : index
    %c0_27 = arith.constant 0 : index
    %44 = vector.load %arg2[%c0_25, %c0_26, %c0_27] : memref<4x64x1xf32, #tpu.memory_space<vmem>>, vector<1x64x1xf32>
    %45 = vector.shape_cast %44 : vector<1x64x1xf32> to vector<64x1xf32>
    %c1_28 = arith.constant 1 : index
    %c0_29 = arith.constant 0 : index
    %c0_30 = arith.constant 0 : index
    %46 = vector.load %arg2[%c1_28, %c0_29, %c0_30] : memref<4x64x1xf32, #tpu.memory_space<vmem>>, vector<1x64x1xf32>
    %47 = vector.shape_cast %46 : vector<1x64x1xf32> to vector<64x1xf32>
    %c2 = arith.constant 2 : index
    %c0_31 = arith.constant 0 : index
    %c0_32 = arith.constant 0 : index
    %48 = vector.load %arg2[%c2, %c0_31, %c0_32] : memref<4x64x1xf32, #tpu.memory_space<vmem>>, vector<1x64x1xf32>
    %49 = vector.shape_cast %48 : vector<1x64x1xf32> to vector<64x1xf32>
    %c3 = arith.constant 3 : index
    %c0_33 = arith.constant 0 : index
    %c0_34 = arith.constant 0 : index
    %50 = vector.load %arg2[%c3, %c0_33, %c0_34] : memref<4x64x1xf32, #tpu.memory_space<vmem>>, vector<1x64x1xf32>
    %51 = vector.shape_cast %50 : vector<1x64x1xf32> to vector<64x1xf32>
    %c0_35 = arith.constant 0 : index
    %c0_36 = arith.constant 0 : index
    %52 = vector.load %arg5[%c0_35, %c0_36] : memref<32x16xbf16, #tpu.memory_space<vmem>>, vector<32x16xbf16>
    %c1_i32 = arith.constant 1 : i32
    %53 = tpu.dynamic_rotate %38 by %c1_i32 dim 0 : vector<64x32xf32>, i32 -> vector<64x32xf32>
    %c63_i32 = arith.constant 63 : i32
    %54 = tpu.dynamic_rotate %38 by %c63_i32 dim 0 : vector<64x32xf32>, i32 -> vector<64x32xf32>
    %55 = vector.broadcast %45 : vector<64x1xf32> to vector<64x32xf32>
    %56 = arith.mulf %55, %53 : vector<64x32xf32>
    %57 = vector.broadcast %47 : vector<64x1xf32> to vector<64x32xf32>
    %58 = arith.mulf %57, %38 : vector<64x32xf32>
    %59 = arith.addf %56, %58 : vector<64x32xf32>
    %60 = arith.truncf %59 : vector<64x32xf32> to vector<64x32xbf16>
    %61 = vector.broadcast %51 : vector<64x1xf32> to vector<64x32xf32>
    %62 = arith.mulf %61, %38 : vector<64x32xf32>
    %63 = vector.broadcast %49 : vector<64x1xf32> to vector<64x32xf32>
    %64 = arith.mulf %63, %54 : vector<64x32xf32>
    %65 = arith.addf %62, %64 : vector<64x32xf32>
    %66 = arith.truncf %65 : vector<64x32xf32> to vector<64x32xbf16>
    %cst_37 = arith.constant dense<0.000000e+00> : vector<64x16xf32>
    %67 = tpu.matmul %60, %52, %cst_37 {dimension_numbers = #tpu.dot_dimension_numbers<[1], [0], [0], [1], [0, 0, 1, 1], [], []>} : vector<64x32xbf16>, vector<32x16xbf16>, vector<64x16xf32> -> vector<64x16xf32>
    %c0_38 = arith.constant 0 : index
    %c0_39 = arith.constant 0 : index
    %68 = vector.load %arg6[%c0_38, %c0_39] : memref<1x16xf32, #tpu.memory_space<vmem>>, vector<1x16xf32>
    %69 = vector.broadcast %68 : vector<1x16xf32> to vector<64x16xf32>
    %70 = arith.addf %67, %69 : vector<64x16xf32>
    %71 = arith.truncf %70 : vector<64x16xf32> to vector<64x16xbf16>
    %c0_40 = arith.constant 0 : index
    %c0_41 = arith.constant 0 : index
    %c0_42 = arith.constant 0 : index
    %c0_43 = arith.constant 0 : index
    %72 = vector.load %arg9[%c0_40, %c0_41, %c0_42, %c0_43] : memref<1x4x64x16xbf16, #tpu.memory_space<vmem>>, vector<1x1x64x16xbf16>
    %73 = vector.shape_cast %72 : vector<1x1x64x16xbf16> to vector<64x16xbf16>
    %74 = vector.shape_cast %71 : vector<64x16xbf16> to vector<1x1x64x16xbf16>
    tpu.vector_store %arg9[%c0_40, %c0_41, %c0_42, %c0_43], %74 {strides = array<i32>} : memref<1x4x64x16xbf16, #tpu.memory_space<vmem>>, vector<1x1x64x16xbf16>,
    %cst_44 = arith.constant dense<0.000000e+00> : vector<64x16xf32>
    %75 = tpu.matmul %66, %52, %cst_44 {dimension_numbers = #tpu.dot_dimension_numbers<[1], [0], [0], [1], [0, 0, 1, 1], [], []>} : vector<64x32xbf16>, vector<32x16xbf16>, vector<64x16xf32> -> vector<64x16xf32>
    %c0_45 = arith.constant 0 : index
    %c0_46 = arith.constant 0 : index
    %76 = vector.load %arg6[%c0_45, %c0_46] : memref<1x16xf32, #tpu.memory_space<vmem>>, vector<1x16xf32>
    %77 = vector.broadcast %76 : vector<1x16xf32> to vector<64x16xf32>
    %78 = arith.addf %75, %77 : vector<64x16xf32>
    %79 = arith.truncf %78 : vector<64x16xf32> to vector<64x16xbf16>
    %c0_47 = arith.constant 0 : index
    %c1_48 = arith.constant 1 : index
    %c0_49 = arith.constant 0 : index
    %c0_50 = arith.constant 0 : index
    %80 = vector.load %arg9[%c0_47, %c1_48, %c0_49, %c0_50] : memref<1x4x64x16xbf16, #tpu.memory_space<vmem>>, vector<1x1x64x16xbf16>
    %81 = vector.shape_cast %80 : vector<1x1x64x16xbf16> to vector<64x16xbf16>
    %82 = vector.shape_cast %79 : vector<64x16xbf16> to vector<1x1x64x16xbf16>
    tpu.vector_store %arg9[%c0_47, %c1_48, %c0_49, %c0_50], %82 {strides = array<i32>} : memref<1x4x64x16xbf16, #tpu.memory_space<vmem>>, vector<1x1x64x16xbf16>,
    %c1_i32_51 = arith.constant 1 : i32
    %83 = tpu.dynamic_rotate %43 by %c1_i32_51 dim 0 : vector<64x32xf32>, i32 -> vector<64x32xf32>
    %c63_i32_52 = arith.constant 63 : i32
    %84 = tpu.dynamic_rotate %43 by %c63_i32_52 dim 0 : vector<64x32xf32>, i32 -> vector<64x32xf32>
    %85 = vector.broadcast %45 : vector<64x1xf32> to vector<64x32xf32>
    %86 = arith.mulf %85, %83 : vector<64x32xf32>
    %87 = vector.broadcast %47 : vector<64x1xf32> to vector<64x32xf32>
    %88 = arith.mulf %87, %43 : vector<64x32xf32>
    %89 = arith.addf %86, %88 : vector<64x32xf32>
    %90 = arith.truncf %89 : vector<64x32xf32> to vector<64x32xbf16>
    %91 = vector.broadcast %51 : vector<64x1xf32> to vector<64x32xf32>
    %92 = arith.mulf %91, %43 : vector<64x32xf32>
    %93 = vector.broadcast %49 : vector<64x1xf32> to vector<64x32xf32>
    %94 = arith.mulf %93, %84 : vector<64x32xf32>
    %95 = arith.addf %92, %94 : vector<64x32xf32>
    %96 = arith.truncf %95 : vector<64x32xf32> to vector<64x32xbf16>
    %cst_53 = arith.constant dense<0.000000e+00> : vector<64x16xf32>
    %97 = tpu.matmul %90, %52, %cst_53 {dimension_numbers = #tpu.dot_dimension_numbers<[1], [0], [0], [1], [0, 0, 1, 1], [], []>} : vector<64x32xbf16>, vector<32x16xbf16>, vector<64x16xf32> -> vector<64x16xf32>
    %c0_54 = arith.constant 0 : index
    %c0_55 = arith.constant 0 : index
    %98 = vector.load %arg6[%c0_54, %c0_55] : memref<1x16xf32, #tpu.memory_space<vmem>>, vector<1x16xf32>
    %99 = vector.broadcast %98 : vector<1x16xf32> to vector<64x16xf32>
    %100 = arith.addf %97, %99 : vector<64x16xf32>
    %101 = arith.truncf %100 : vector<64x16xf32> to vector<64x16xbf16>
    %c0_56 = arith.constant 0 : index
    %c2_57 = arith.constant 2 : index
    %c0_58 = arith.constant 0 : index
    %c0_59 = arith.constant 0 : index
    %102 = vector.load %arg9[%c0_56, %c2_57, %c0_58, %c0_59] : memref<1x4x64x16xbf16, #tpu.memory_space<vmem>>, vector<1x1x64x16xbf16>
    %103 = vector.shape_cast %102 : vector<1x1x64x16xbf16> to vector<64x16xbf16>
    %104 = vector.shape_cast %101 : vector<64x16xbf16> to vector<1x1x64x16xbf16>
    tpu.vector_store %arg9[%c0_56, %c2_57, %c0_58, %c0_59], %104 {strides = array<i32>} : memref<1x4x64x16xbf16, #tpu.memory_space<vmem>>, vector<1x1x64x16xbf16>,
    %cst_60 = arith.constant dense<0.000000e+00> : vector<64x16xf32>
    %105 = tpu.matmul %96, %52, %cst_60 {dimension_numbers = #tpu.dot_dimension_numbers<[1], [0], [0], [1], [0, 0, 1, 1], [], []>} : vector<64x32xbf16>, vector<32x16xbf16>, vector<64x16xf32> -> vector<64x16xf32>
    %c0_61 = arith.constant 0 : index
    %c0_62 = arith.constant 0 : index
    %106 = vector.load %arg6[%c0_61, %c0_62] : memref<1x16xf32, #tpu.memory_space<vmem>>, vector<1x16xf32>
    %107 = vector.broadcast %106 : vector<1x16xf32> to vector<64x16xf32>
    %108 = arith.addf %105, %107 : vector<64x16xf32>
    %109 = arith.truncf %108 : vector<64x16xf32> to vector<64x16xbf16>
    %c0_63 = arith.constant 0 : index
    %c3_64 = arith.constant 3 : index
    %c0_65 = arith.constant 0 : index
    %c0_66 = arith.constant 0 : index
    %110 = vector.load %arg9[%c0_63, %c3_64, %c0_65, %c0_66] : memref<1x4x64x16xbf16, #tpu.memory_space<vmem>>, vector<1x1x64x16xbf16>
    %111 = vector.shape_cast %110 : vector<1x1x64x16xbf16> to vector<64x16xbf16>
    %112 = vector.shape_cast %109 : vector<64x16xbf16> to vector<1x1x64x16xbf16>
    tpu.vector_store %arg9[%c0_63, %c3_64, %c0_65, %c0_66], %112 {strides = array<i32>} : memref<1x4x64x16xbf16, #tpu.memory_space<vmem>>, vector<1x1x64x16xbf16>,
    return
  }
  func.func @transform_0(%arg0: i32) -> (i32, i32, i32) {
    %c0_i32 = arith.constant 0 : i32
    %c0_i32_0 = arith.constant 0 : i32
    %c0_i32_1 = arith.constant 0 : i32
    return %arg0, %c0_i32, %c0_i32_0 : i32, i32, i32
  }
  func.func @transform_1(%arg0: i32) -> (i32, i32, i32) {
    %c0_i32 = arith.constant 0 : i32
    %c0_i32_0 = arith.constant 0 : i32
    %c0_i32_1 = arith.constant 0 : i32
    %c0_i32_2 = arith.constant 0 : i32
    return %c0_i32, %c0_i32_0, %c0_i32_1 : i32, i32, i32
  }
  func.func @transform_2(%arg0: i32) -> (i32, i32) {
    %c0_i32 = arith.constant 0 : i32
    %c0_i32_0 = arith.constant 0 : i32
    %c0_i32_1 = arith.constant 0 : i32
    return %c0_i32, %c0_i32_0 : i32, i32
  }
  func.func @transform_3(%arg0: i32) -> (i32, i32) {
    %c0_i32 = arith.constant 0 : i32
    %c0_i32_0 = arith.constant 0 : i32
    %c0_i32_1 = arith.constant 0 : i32
    return %c0_i32, %c0_i32_0 : i32, i32
  }
  func.func @transform_4(%arg0: i32) -> (i32, i32) {
    %c0_i32 = arith.constant 0 : i32
    %c0_i32_0 = arith.constant 0 : i32
    %c0_i32_1 = arith.constant 0 : i32
    return %c0_i32, %c0_i32_0 : i32, i32
  }
  func.func @transform_5(%arg0: i32) -> (i32, i32) {
    %c0_i32 = arith.constant 0 : i32
    %c0_i32_0 = arith.constant 0 : i32
    %c0_i32_1 = arith.constant 0 : i32
    return %c0_i32, %c0_i32_0 : i32, i32
  }
  func.func @transform_6(%arg0: i32) -> (i32, i32, i32, i32) {
    %c0_i32 = arith.constant 0 : i32
    %c0_i32_0 = arith.constant 0 : i32
    %c0_i32_1 = arith.constant 0 : i32
    %c0_i32_2 = arith.constant 0 : i32
    return %arg0, %c0_i32, %c0_i32_0, %c0_i32_1 : i32, i32, i32, i32
  }
  func.func @transform_7(%arg0: i32) -> (i32, i32, i32, i32) {
    %c0_i32 = arith.constant 0 : i32
    %c0_i32_0 = arith.constant 0 : i32
    %c0_i32_1 = arith.constant 0 : i32
    %c0_i32_2 = arith.constant 0 : i32
    return %arg0, %c0_i32, %c0_i32_0, %c0_i32_1 : i32, i32, i32, i32
  }
  func.func @transform_8(%arg0: i32) -> (i32, i32, i32, i32) {
    %c0_i32 = arith.constant 0 : i32
    %c0_i32_0 = arith.constant 0 : i32
    %c0_i32_1 = arith.constant 0 : i32
    %c0_i32_2 = arith.constant 0 : i32
    return %arg0, %c0_i32, %c0_i32_0, %c0_i32_1 : i32, i32, i32, i32
  }
}

</mosaic_0001>

<llo_original>
// kernel: tpu_custom_call.1
$region0: #{tpu_custom_call.1}
  #allocation0 [shape = 'u32[]', space=smem, size = 0x4, offset = 0x4, fixed_abs, tag = 'smem constant byte address 0x4 - core index']
  #allocation1 [shape = 'u32[144,128]{1,0:T(1,128)}', space=vmem, size = 0x12000, scoped, tag = 'internal scratch']
  %s0 = inlined_call_operand.vmem [shape: bf16[2,64,32], index: 0, kind: input, shape index: {}]
  %s1 = inlined_call_operand.vmem [shape: f32[4,64,1], index: 1, kind: input, shape index: {}]
  %s2 = inlined_call_operand.vmem [shape: bf16[32,32], index: 2, kind: input, shape index: {}]
  %s3 = inlined_call_operand.vmem [shape: f32[1,32], index: 3, kind: input, shape index: {}]
  %s4 = inlined_call_operand.vmem [shape: bf16[32,16], index: 4, kind: input, shape index: {}]
  %s5 = inlined_call_operand.vmem [shape: f32[1,16], index: 5, kind: input, shape index: {}]
  %s6 = inlined_call_operand.vmem [shape: bf16[2,2,64,8], index: 6, kind: output, shape index: {0}]
  %s7 = inlined_call_operand.vmem [shape: bf16[2,2,64,8], index: 7, kind: output, shape index: {1}]
  %s8 = inlined_call_operand.vmem [shape: bf16[2,4,64,16], index: 8, kind: output, shape index: {2}]
  %9 = xla_tuple %s6, %s7, %s8
  %s10 = sld [smem:[#allocation0]]
  $region73: #{tpu_custom_call.1} parent=0
    _
  %s12 = ssub.s32 1, %s10
  %s13 = scalar_select 0, %s12, %s10
  loop: start=0, step=1, limit=4
  $region2: #{tpu_custom_call.1} parent=0 // loop_pre_header
    _
  $region3: #{tpu_custom_call.1} parent=0 // loop_header
    %s15 = sphi 0, %s19
    %p16 = scmp.ge.s32.totalorder %s15, 4
    %s25 = sphi 0, %s27
    %s28 = sphi 0, %s25
    %s29 = sphi 0, %s28
    %s45 = sphi 0, %s29
    %s49 = sphi 0, %s49
    %s51 = sphi 0, %s49
    %s52 = sphi 0, %s51
    %s66 = sphi 0, %s52
    %s70 = sphi 0, %s70
    %s72 = sphi 0, %s70
    %s73 = sphi 0, %s72
    %s87 = sphi 0, %s73
    %s91 = sphi 0, %s91
    %s93 = sphi 0, %s91
    %s94 = sphi 0, %s93
    %s108 = sphi 0, %s94
    %s112 = sphi 0, %s112
    %s114 = sphi 0, %s112
    %s115 = sphi 0, %s114
    %s129 = sphi 0, %s115
    %s133 = sphi 0, %s133
    %s135 = sphi 0, %s133
    %s136 = sphi 0, %s135
    %s150 = sphi 0, %s136
    %s156 = sphi 0, %s158
    %s159 = sphi 0, %s156
    %s160 = sphi 0, %s159
    %s176 = sphi 0, %s160
    %s182 = sphi 0, %s184
    %s185 = sphi 0, %s182
    %s186 = sphi 0, %s185
    %s202 = sphi 0, %s186
    %s208 = sphi 0, %s210
    %s211 = sphi 0, %s208
    %s212 = sphi 0, %s211
    %s228 = sphi 0, %s212
  $region4: #{tpu_custom_call.1} parent=0 // loop_header_branch
    %18 = sbr.rel (%p16) target = $region8
  $region5: #{tpu_custom_call.1} parent=0 // loop_body
    %s20 = ssub.s32 %s15, 1
    %s21 = ssub.s32 %s15, 2
    %s22 = sadd.s32 %s15, 1
    %s23 = ssub.s32 %s15, %s22
    %p24 = scmp.eq.s32.totalorder %s23, 0
    %s26 = sadd.s32 %s25, 1
    %s27 = scalar_select %p24, %s25, %s26
    %p30 = pneg %p24
    %p31 = scmp.eq.s32.totalorder %s15, 1
    %p32 = por %p30, %p31
    %p33 = scmp.ne.s32.totalorder %s25, %s28
    %p34 = scmp.eq.s32.totalorder %s15, 0
    %p35 = por %p33, %p34
    %p36 = scmp.ne.s32.totalorder %s25, %s28
    %p37 = scmp.eq.s32.totalorder %s20, 1
    %p38 = por %p36, %p37
    %p39 = scmp.ne.s32.totalorder %s28, %s29
    %p40 = scmp.eq.s32.totalorder %s20, 0
    %p41 = por %p39, %p40
    %p42 = scmp.ne.s32.totalorder %s28, %s29
    %p43 = scmp.eq.s32.totalorder %s21, 1
    %p44 = por %p42, %p43
    %p46 = scmp.ne.s32.totalorder %s29, %s45
    %p47 = scmp.eq.s32.totalorder %s21, 0
    %p48 = por %p46, %p47
    %s50 = sadd.s32 %s49, 1
    %p53 = scmp.eq.s32.totalorder %s15, 1
    %p54 = scmp.ne.s32.totalorder %s49, %s51
    %p55 = scmp.eq.s32.totalorder %s15, 0
    %p56 = por %p54, %p55
    %p57 = scmp.ne.s32.totalorder %s49, %s51
    %p58 = scmp.eq.s32.totalorder %s20, 1
    %p59 = por %p57, %p58
    %p60 = scmp.ne.s32.totalorder %s51, %s52
    %p61 = scmp.eq.s32.totalorder %s20, 0
    %p62 = por %p60, %p61
    %p63 = scmp.ne.s32.totalorder %s51, %s52
    %p64 = scmp.eq.s32.totalorder %s21, 1
    %p65 = por %p63, %p64
    %p67 = scmp.ne.s32.totalorder %s52, %s66
    %p68 = scmp.eq.s32.totalorder %s21, 0
    %p69 = por %p67, %p68
    %s71 = sadd.s32 %s70, 1
    %p74 = scmp.eq.s32.totalorder %s15, 1
    %p75 = scmp.ne.s32.totalorder %s70, %s72
    %p76 = scmp.eq.s32.totalorder %s15, 0
    %p77 = por %p75, %p76
    %p78 = scmp.ne.s32.totalorder %s70, %s72
    %p79 = scmp.eq.s32.totalorder %s20, 1
    %p80 = por %p78, %p79
    %p81 = scmp.ne.s32.totalorder %s72, %s73
    %p82 = scmp.eq.s32.totalorder %s20, 0
    %p83 = por %p81, %p82
    %p84 = scmp.ne.s32.totalorder %s72, %s73
    %p85 = scmp.eq.s32.totalorder %s21, 1
    %p86 = por %p84, %p85
    %p88 = scmp.ne.s32.totalorder %s73, %s87
    %p89 = scmp.eq.s32.totalorder %s21, 0
    %p90 = por %p88, %p89
    %s92 = sadd.s32 %s91, 1
    %p95 = scmp.eq.s32.totalorder %s15, 1
    %p96 = scmp.ne.s32.totalorder %s91, %s93
    %p97 = scmp.eq.s32.totalorder %s15, 0
    %p98 = por %p96, %p97
    %p99 = scmp.ne.s32.totalorder %s91, %s93
    %p100 = scmp.eq.s32.totalorder %s20, 1
    %p101 = por %p99, %p100
    %p102 = scmp.ne.s32.totalorder %s93, %s94
    %p103 = scmp.eq.s32.totalorder %s20, 0
    %p104 = por %p102, %p103
    %p105 = scmp.ne.s32.totalorder %s93, %s94
    %p106 = scmp.eq.s32.totalorder %s21, 1
    %p107 = por %p105, %p106
    %p109 = scmp.ne.s32.totalorder %s94, %s108
    %p110 = scmp.eq.s32.totalorder %s21, 0
    %p111 = por %p109, %p110
    %s113 = sadd.s32 %s112, 1
    %p116 = scmp.eq.s32.totalorder %s15, 1
    %p117 = scmp.ne.s32.totalorder %s112, %s114
    %p118 = scmp.eq.s32.totalorder %s15, 0
    %p119 = por %p117, %p118
    %p120 = scmp.ne.s32.totalorder %s112, %s114
    %p121 = scmp.eq.s32.totalorder %s20, 1
    %p122 = por %p120, %p121
    %p123 = scmp.ne.s32.totalorder %s114, %s115
    %p124 = scmp.eq.s32.totalorder %s20, 0
    %p125 = por %p123, %p124
    %p126 = scmp.ne.s32.totalorder %s114, %s115
    %p127 = scmp.eq.s32.totalorder %s21, 1
    %p128 = por %p126, %p127
    %p130 = scmp.ne.s32.totalorder %s115, %s129
    %p131 = scmp.eq.s32.totalorder %s21, 0
    %p132 = por %p130, %p131
    %s134 = sadd.s32 %s133, 1
    %p137 = scmp.eq.s32.totalorder %s15, 1
    %p138 = scmp.ne.s32.totalorder %s133, %s135
    %p139 = scmp.eq.s32.totalorder %s15, 0
    %p140 = por %p138, %p139
    %p141 = scmp.ne.s32.totalorder %s133, %s135
    %p142 = scmp.eq.s32.totalorder %s20, 1
    %p143 = por %p141, %p142
    %p144 = scmp.ne.s32.totalorder %s135, %s136
    %p145 = scmp.eq.s32.totalorder %s20, 0
    %p146 = por %p144, %p145
    %p147 = scmp.ne.s32.totalorder %s135, %s136
    %p148 = scmp.eq.s32.totalorder %s21, 1
    %p149 = por %p147, %p148
    %p151 = scmp.ne.s32.totalorder %s136, %s150
    %p152 = scmp.eq.s32.totalorder %s21, 0
    %p153 = por %p151, %p152
    %s154 = ssub.s32 %s15, %s22
    %p155 = scmp.eq.s32.totalorder %s154, 0
    %s157 = sadd.s32 %s156, 1
    %s158 = scalar_select %p155, %s156, %s157
    %p161 = pneg %p155
    %p162 = scmp.eq.s32.totalorder %s15, 1
    %p163 = por %p161, %p162
    %p164 = scmp.ne.s32.totalorder %s156, %s159
    %p165 = scmp.eq.s32.totalorder %s15, 0
    %p166 = por %p164, %p165
    %p167 = scmp.ne.s32.totalorder %s156, %s159
    %p168 = scmp.eq.s32.totalorder %s20, 1
    %p169 = por %p167, %p168
    %p170 = scmp.ne.s32.totalorder %s159, %s160
    %p171 = scmp.eq.s32.totalorder %s20, 0
    %p172 = por %p170, %p171
    %p173 = scmp.ne.s32.totalorder %s159, %s160
    %p174 = scmp.eq.s32.totalorder %s21, 1
    %p175 = por %p173, %p174
    %p177 = scmp.ne.s32.totalorder %s160, %s176
    %p178 = scmp.eq.s32.totalorder %s21, 0
    %p179 = por %p177, %p178
    %s180 = ssub.s32 %s15, %s22
    %p181 = scmp.eq.s32.totalorder %s180, 0
    %s183 = sadd.s32 %s182, 1
    %s184 = scalar_select %p181, %s182, %s183
    %p187 = pneg %p181
    %p188 = scmp.eq.s32.totalorder %s15, 1
    %p189 = por %p187, %p188
    %p190 = scmp.ne.s32.totalorder %s182, %s185
    %p191 = scmp.eq.s32.totalorder %s15, 0
    %p192 = por %p190, %p191
    %p193 = scmp.ne.s32.totalorder %s182, %s185
    %p194 = scmp.eq.s32.totalorder %s20, 1
    %p195 = por %p193, %p194
    %p196 = scmp.ne.s32.totalorder %s185, %s186
    %p197 = scmp.eq.s32.totalorder %s20, 0
    %p198 = por %p196, %p197
    %p199 = scmp.ne.s32.totalorder %s185, %s186
    %p200 = scmp.eq.s32.totalorder %s21, 1
    %p201 = por %p199, %p200
    %p203 = scmp.ne.s32.totalorder %s186, %s202
    %p204 = scmp.eq.s32.totalorder %s21, 0
    %p205 = por %p203, %p204
    %s206 = ssub.s32 %s15, %s22
    %p207 = scmp.eq.s32.totalorder %s206, 0
    %s209 = sadd.s32 %s208, 1
    %s210 = scalar_select %p207, %s208, %s209
    %p213 = pneg %p207
    %p214 = scmp.eq.s32.totalorder %s15, 1
    %p215 = por %p213, %p214
    %p216 = scmp.ne.s32.totalorder %s208, %s211
    %p217 = scmp.eq.s32.totalorder %s15, 0
    %p218 = por %p216, %p217
    %p219 = scmp.ne.s32.totalorder %s208, %s211
    %p220 = scmp.eq.s32.totalorder %s20, 1
    %p221 = por %p219, %p220
    %p222 = scmp.ne.s32.totalorder %s211, %s212
    %p223 = scmp.eq.s32.totalorder %s20, 0
    %p224 = por %p222, %p223
    %p225 = scmp.ne.s32.totalorder %s211, %s212
    %p226 = scmp.eq.s32.totalorder %s21, 1
    %p227 = por %p225, %p226
    %p229 = scmp.ne.s32.totalorder %s212, %s228
    %p230 = scmp.eq.s32.totalorder %s21, 0
    %p231 = por %p229, %p230
    %p232 = scmp.le.s32.totalorder 1, %s15
    %p233 = scmp.lt.s32.totalorder %s15, 3
    %p234 = pnand %p232, %p233
    %p235 = pneg %p234
    // Predicated region
    $region9: #{tpu_custom_call.1} parent=5 // pred_check
      _
    $region10: #{tpu_custom_call.1} parent=5 // pred_check_branch
      %237 = sbr.rel (%p234) target = $region12
    $region11: #{tpu_custom_call.1} parent=5 // pred_region
      %s238 = ssub.s32 %s15, 1
      // Predicated region
      $region13: #{tpu_custom_call.1} parent=11 // pred_check
        %p239 = pneg %p62
      $region14: #{tpu_custom_call.1} parent=11 // pred_check_branch
        %241 = sbr.rel (%p239) target = $region16
      $region15: #{tpu_custom_call.1} parent=11 // pred_region
        _
      $region16: #{tpu_custom_call.1} parent=11 // pred_fallthru
        _
      // Predicated region
      $region17: #{tpu_custom_call.1} parent=11 // pred_check
        %p242 = pneg %p83
      $region18: #{tpu_custom_call.1} parent=11 // pred_check_branch
        %244 = sbr.rel (%p242) target = $region20
      $region19: #{tpu_custom_call.1} parent=11 // pred_region
        _
      $region20: #{tpu_custom_call.1} parent=11 // pred_fallthru
        _
      // Predicated region
      $region21: #{tpu_custom_call.1} parent=11 // pred_check
        %p245 = pneg %p104
      $region22: #{tpu_custom_call.1} parent=11 // pred_check_branch
        %247 = sbr.rel (%p245) target = $region24
      $region23: #{tpu_custom_call.1} parent=11 // pred_region
        _
      $region24: #{tpu_custom_call.1} parent=11 // pred_fallthru
        _
      // Predicated region
      $region25: #{tpu_custom_call.1} parent=11 // pred_check
        %p248 = pneg %p125
      $region26: #{tpu_custom_call.1} parent=11 // pred_check_branch
        %250 = sbr.rel (%p248) target = $region28
      $region27: #{tpu_custom_call.1} parent=11 // pred_region
        _
      $region28: #{tpu_custom_call.1} parent=11 // pred_fallthru
        _
      // Predicated region
      $region29: #{tpu_custom_call.1} parent=11 // pred_check
        %p251 = pneg %p146
      $region30: #{tpu_custom_call.1} parent=11 // pred_check_branch
        %253 = sbr.rel (%p251) target = $region32
      $region31: #{tpu_custom_call.1} parent=11 // pred_region
        _
      $region32: #{tpu_custom_call.1} parent=11 // pred_fallthru
        _
    $region12: #{tpu_custom_call.1} parent=5 // pred_fallthru
      _
    %p254 = scmp.lt.s32.totalorder %s15, 2
    // Predicated region
    $region33: #{tpu_custom_call.1} parent=5 // pred_check
      %p255 = pneg %p254
    $region34: #{tpu_custom_call.1} parent=5 // pred_check_branch
      %257 = sbr.rel (%p255) target = $region36
    $region35: #{tpu_custom_call.1} parent=5 // pred_region
      // Predicated region
      $region37: #{tpu_custom_call.1} parent=35 // pred_check
        %p258 = pneg %p35
      $region38: #{tpu_custom_call.1} parent=35 // pred_check_branch
        %260 = sbr.rel (%p258) target = $region40
      $region39: #{tpu_custom_call.1} parent=35 // pred_region
        %p261 = scmp.lt.s32.totalorder %s15, 1
        %s262 = scalar_select %p261, %s15, 1
        %s263 = smul.addr %s262, 8
        %s264 = smul.addr %s263, 4
        %s265 = scalar_lea.vmem %s0, %s264
      $region40: #{tpu_custom_call.1} parent=35 // pred_fallthru
        _
    $region36: #{tpu_custom_call.1} parent=5 // pred_fallthru
      _
    %p266 = scmp.le.s32.totalorder 1, %s15
    %p267 = scmp.lt.s32.totalorder %s15, 3
    %p268 = pnand %p266, %p267
    %p269 = pneg %p268
    // Predicated region
    $region41: #{tpu_custom_call.1} parent=5 // pred_check
      _
    $region42: #{tpu_custom_call.1} parent=5 // pred_check_branch
      %271 = sbr.rel (%p268) target = $region44
    $region43: #{tpu_custom_call.1} parent=5 // pred_region
      %s272 = ssub.s32 %s15, 1
      %p273 = scmp.lt.s32.totalorder %s20, 1
      %s274 = scalar_select %p273, %s20, 1
      %s275 = smul.addr %s274, 8
      %s276 = smul.addr %s275, 4
      %s277 = scalar_lea.vmem %s0, %s276
      %p278 = pneg %p41
      %p279 = pneg %p38
      %p280 = pneg %p62
      %p281 = pneg %p59
      %p282 = pneg %p83
      %p283 = pneg %p80
      %p284 = pneg %p104
      %p285 = pneg %p101
      %p286 = pneg %p125
      %p287 = pneg %p122
      %p288 = pneg %p146
      %p289 = pneg %p143
      %p290 = pneg %p172
      %p291 = pneg %p169
      %p292 = scmp.lt.s32.totalorder %s20, 1
      %s293 = scalar_select %p292, %s20, 1
      %s294 = smul.addr %s293, 16
      %s295 = smul.addr %s294, 4
      %s296 = scalar_lea.vmem %s6, %s295
      %p297 = pneg %p198
      %p298 = pneg %p195
      %p299 = scmp.lt.s32.totalorder %s20, 1
      %s300 = scalar_select %p299, %s20, 1
      %s301 = smul.addr %s300, 16
      %s302 = smul.addr %s301, 4
      %s303 = scalar_lea.vmem %s7, %s302
      %p304 = pneg %p224
      %p305 = pneg %p221
      %p306 = scmp.lt.s32.totalorder %s20, 1
      %s307 = scalar_select %p306, %s20, 1
      %s308 = smul.addr %s307, 32
      %s309 = smul.addr %s308, 4
      %s310 = scalar_lea.vmem %s8, %s309
      %p311 = scmp.lt.s32.totalorder %s20, 1
      %s312 = scalar_select %p311, %s20, 1
      %s313 = smul.addr %s312, 8
      %s314 = smul.addr %s313, 4
      %s315 = scalar_lea.vmem %s0, %s314
      %p316 = scmp.lt.s32.totalorder %s20, 1
      %s317 = scalar_select %p316, %s20, 1
      %s318 = smul.addr %s317, 16
      %s319 = smul.addr %s318, 4
      %s320 = scalar_lea.vmem %s6, %s319
      %p321 = scmp.lt.s32.totalorder %s20, 1
      %s322 = scalar_select %p321, %s20, 1
      %s323 = smul.addr %s322, 16
      %s324 = smul.addr %s323, 4
      %s325 = scalar_lea.vmem %s7, %s324
      %p326 = scmp.lt.s32.totalorder %s20, 1
      %s327 = scalar_select %p326, %s20, 1
      %s328 = smul.addr %s327, 32
      %s329 = smul.addr %s328, 4
      %s330 = scalar_lea.vmem %s8, %s329
      %v332 = vld [vmem:[%s315] sm:$0xf]
      %v333 = vld [vmem:[%s315 + $0x4] sm:$0xf]
      %v334 = vld [vmem:[%s315 + $0x8] sm:$0xf]
      %v335 = vld [vmem:[%s315 + $0xc] sm:$0xf]
      %v336 = vld [vmem:[%s315 + $0x10] sm:$0xf]
      %v337 = vld [vmem:[%s315 + $0x14] sm:$0xf]
      %v338 = vld [vmem:[%s315 + $0x18] sm:$0xf]
      %v339 = vld [vmem:[%s315 + $0x1c] sm:$0xf]
      %v340 = vld [vmem:[%s2] sm:$0xf]
      %v341 = vld [vmem:[%s2 + $0x4] sm:$0xf]
      %v342 = vld [vmem:[%s2 + $0x8] sm:$0xf]
      %v343 = vld [vmem:[%s2 + $0xc] sm:$0xf]
      %v344 = vld [vmem:[%s3] sm:$0x1]
      %v346 = vlaneseq
      %v347 = vshrl.u32 %v346, 7
      %v348 = vsub.s32 0, %v347
      %v349 = vrot.slane %v344, %v348
      %v359 = vunpack.c.l.b16 %v332
      %v360 = vunpack.c.l.b16 %v333
      %v361 = vunpack.c.l.b16 %v334
      %v362 = vunpack.c.l.b16 %v335
      %v363 = vunpack.c.l.b16 %v336
      %v364 = vunpack.c.l.b16 %v337
      %v365 = vunpack.c.l.b16 %v338
      %v366 = vunpack.c.l.b16 %v339
      %v367 = vpack.c.b16 %v360, %v359
      %v368 = vpack.c.b16 %v362, %v361
      %v369 = vpack.c.b16 %v364, %v363
      %v370 = vpack.c.b16 %v366, %v365
      %v375 = vunpack.c.l.b16 %v340
      %v376 = vunpack.c.l.b16 %v341
      %v377 = vunpack.c.l.b16 %v342
      %v378 = vunpack.c.l.b16 %v343
      %v379 = vpack.c.b16 %v376, %v375
      %v380 = vpack.c.b16 %v378, %v377
      %vm383 = vcmask 261120
      %v385 = vsel %vm383, %v367, 0
      %v388 = vsel %vm383, %v368, 0
      %v391 = vsel %vm383, %v369, 0
      %v394 = vsel %vm383, %v370, 0
      %396 = vmatprep.subr.bf16.mxu0 0
      %397 = vmatpush1.bf16.msra.mxu0 0
      %398 = vmatprep.subr.bf16.mxu0 0
      %399 = vmatpush1.bf16.msra.mxu0 0
      %400 = vmatprep.subr.bf16.mxu0 0
      %401 = vmatpush1.bf16.msra.mxu0 0
      %402 = vmatprep.subr.bf16.mxu0 0
      %403 = vmatpush1.bf16.msra.mxu0 0
      %404 = vmatprep.subr.bf16.mxu0 0
      %405 = vmatpush1.bf16.msra.mxu0 0
      %406 = vmatprep.subr.bf16.mxu0 0
      %407 = vmatpush1.bf16.msra.mxu0 0
      %408 = vmatprep.subr.bf16.mxu0 0
      %409 = vmatpush1.bf16.msra.mxu0 %v380
      %410 = vmatprep.subr.bf16.mxu0 0
      %411 = vmatpush1.bf16.msra.mxu0 %v379
      %412 = vmatprep.subr.bf16.mxu0 0
      %413 = vmatpush2.bf16.msra.mxu0 0
      %414 = vmatprep.subr.bf16.mxu0 0
      %415 = vmatpush2.bf16.msra.mxu0 0
      %416 = vmatprep.subr.bf16.mxu0 0
      %417 = vmatpush2.bf16.msra.mxu0 0
      %418 = vmatprep.subr.bf16.mxu0 0
      %419 = vmatpush2.bf16.msra.mxu0 0
      %420 = vmatprep.subr.bf16.mxu0 0
      %421 = vmatpush2.bf16.msra.mxu0 0
      %422 = vmatprep.subr.bf16.mxu0 0
      %423 = vmatpush2.bf16.msra.mxu0 0
      %424 = vmatprep.subr.bf16.mxu0 0
      %425 = vmatpush2.bf16.msra.mxu0 0
      %426 = vmatprep.subr.bf16.mxu0 0
      %427 = vmatpush2.bf16.msra.mxu0 0
      %428 = vmatprep.mubr.bf16.mxu0 0
      %429 = vmatmul.mubr.bf16.gmra.mxu0 %v385
      %v430 = vpop.f32.mrf.mxu0
      %v431 = vadd.f32 %v349, %v430
      %v432 = vpop.f32.mrf.mxu0
      %v433 = vpop.f32.mrf.mxu0
      %v434 = vadd.f32 %v349, %v433
      %v435 = vpop.f32.mrf.mxu0
      %436 = vmatprep.mubr.bf16.mxu0 0
      %437 = vmatmul.mubr.bf16.gmra.mxu0 %v388
      %v438 = vpop.f32.mrf.mxu0
      %v439 = vadd.f32 %v349, %v438
      %v440 = vpop.f32.mrf.mxu0
      %v441 = vpop.f32.mrf.mxu0
      %v442 = vadd.f32 %v349, %v441
      %v443 = vpop.f32.mrf.mxu0
      %444 = vmatprep.mubr.bf16.mxu0 0
      %445 = vmatmul.mubr.bf16.gmra.mxu0 %v391
      %v446 = vpop.f32.mrf.mxu0
      %v447 = vadd.f32 %v349, %v446
      %v448 = vpop.f32.mrf.mxu0
      %v449 = vpop.f32.mrf.mxu0
      %v450 = vadd.f32 %v349, %v449
      %v451 = vpop.f32.mrf.mxu0
      %452 = vmatprep.mubr.bf16.mxu0 0
      %453 = vmatmul.mubr.bf16.gmra.mxu0 %v394
      %v454 = vpop.f32.mrf.mxu0
      %v455 = vadd.f32 %v349, %v454
      %v456 = vpop.f32.mrf.mxu0
      %v457 = vpop.f32.mrf.mxu0
      %v458 = vadd.f32 %v349, %v457
      %v459 = vpop.f32.mrf.mxu0
      %460 = vdwg.mxu0
      %v461 = vpack.c.bf16 %v434, %v431
      %v462 = vpack.c.bf16 %v442, %v439
      %v463 = vpack.c.bf16 %v450, %v447
      %v464 = vpack.c.bf16 %v458, %v455
      %v469 = vunpack.c.l.b16 %v461
      %v470 = vunpack.c.h.b16 %v461
      %v471 = vunpack.c.l.b16 %v462
      %v472 = vunpack.c.h.b16 %v462
      %v473 = vunpack.c.l.b16 %v463
      %v474 = vunpack.c.h.b16 %v463
      %v475 = vunpack.c.l.b16 %v464
      %v476 = vunpack.c.h.b16 %v464
      %v477 = vpack.c.b16 %v469, %v469
      %v478 = vpack.c.b16 %v470, %v470
      %v479 = vpack.c.b16 %v471, %v471
      %v480 = vpack.c.b16 %v472, %v472
      %v481 = vpack.c.b16 %v473, %v473
      %v482 = vpack.c.b16 %v474, %v474
      %v483 = vpack.c.b16 %v475, %v475
      %v484 = vpack.c.b16 %v476, %v476
      %vm493 = vcmask 60416
      %494 = vst.msk [vmem:[%s320] sm:$0xf] %vm493, %v477
      %495 = vst.msk [vmem:[%s320 + $0x4] sm:$0xf] %vm493, %v478
      %496 = vst.msk [vmem:[%s320 + $0x8] sm:$0xf] %vm493, %v479
      %497 = vst.msk [vmem:[%s320 + $0xc] sm:$0xf] %vm493, %v480
      %498 = vst.msk [vmem:[%s320 + $0x10] sm:$0xf] %vm493, %v481
      %499 = vst.msk [vmem:[%s320 + $0x14] sm:$0xf] %vm493, %v482
      %500 = vst.msk [vmem:[%s320 + $0x18] sm:$0xf] %vm493, %v483
      %501 = vst.msk [vmem:[%s320 + $0x1c] sm:$0xf] %vm493, %v484
      %502 = vrot.lane.b32.xlu0 %v477, 112
      %v503 = vpop.permute.xlu0 %502
      %504 = vrot.lane.b32.xlu0 %v478, 112
      %v505 = vpop.permute.xlu0 %504
      %506 = vrot.lane.b32.xlu0 %v479, 112
      %v507 = vpop.permute.xlu0 %506
      %508 = vrot.lane.b32.xlu0 %v480, 112
      %v509 = vpop.permute.xlu0 %508
      %510 = vrot.lane.b32.xlu0 %v481, 112
      %v511 = vpop.permute.xlu0 %510
      %512 = vrot.lane.b32.xlu0 %v482, 112
      %v513 = vpop.permute.xlu0 %512
      %514 = vrot.lane.b32.xlu0 %v483, 112
      %v515 = vpop.permute.xlu0 %514
      %516 = vrot.lane.b32.xlu0 %v484, 112
      %v517 = vpop.permute.xlu0 %516
      %526 = vst.msk [vmem:[%s325] sm:$0xf] %vm493, %v503
      %527 = vst.msk [vmem:[%s325 + $0x4] sm:$0xf] %vm493, %v505
      %528 = vst.msk [vmem:[%s325 + $0x8] sm:$0xf] %vm493, %v507
      %529 = vst.msk [vmem:[%s325 + $0xc] sm:$0xf] %vm493, %v509
      %530 = vst.msk [vmem:[%s325 + $0x10] sm:$0xf] %vm493, %v511
      %531 = vst.msk [vmem:[%s325 + $0x14] sm:$0xf] %vm493, %v513
      %532 = vst.msk [vmem:[%s325 + $0x18] sm:$0xf] %vm493, %v515
      %533 = vst.msk [vmem:[%s325 + $0x1c] sm:$0xf] %vm493, %v517
      %534 = vrot.lane.b32.xlu0 %v477, 120
      %v535 = vpop.permute.xlu0 %534
      %536 = vrot.lane.b32.xlu0 %v478, 120
      %v537 = vpop.permute.xlu0 %536
      %538 = vrot.lane.b32.xlu0 %v479, 120
      %v539 = vpop.permute.xlu0 %538
      %540 = vrot.lane.b32.xlu0 %v480, 120
      %v541 = vpop.permute.xlu0 %540
      %542 = vrot.lane.b32.xlu0 %v481, 120
      %v543 = vpop.permute.xlu0 %542
      %544 = vrot.lane.b32.xlu0 %v482, 120
      %v545 = vpop.permute.xlu0 %544
      %546 = vrot.lane.b32.xlu0 %v483, 120
      %v547 = vpop.permute.xlu0 %546
      %548 = vrot.lane.b32.xlu0 %v484, 120
      %v549 = vpop.permute.xlu0 %548
      %s558 = scalar_lea.vmem %s320, 32
      %559 = vst.msk [vmem:[%s558] sm:$0xf] %vm493, %v535
      %560 = vst.msk [vmem:[%s558 + $0x4] sm:$0xf] %vm493, %v537
      %561 = vst.msk [vmem:[%s558 + $0x8] sm:$0xf] %vm493, %v539
      %562 = vst.msk [vmem:[%s558 + $0xc] sm:$0xf] %vm493, %v541
      %563 = vst.msk [vmem:[%s558 + $0x10] sm:$0xf] %vm493, %v543
      %564 = vst.msk [vmem:[%s558 + $0x14] sm:$0xf] %vm493, %v545
      %565 = vst.msk [vmem:[%s558 + $0x18] sm:$0xf] %vm493, %v547
      %566 = vst.msk [vmem:[%s558 + $0x1c] sm:$0xf] %vm493, %v549
      %567 = vrot.lane.b32.xlu0 %v477, 104
      %v568 = vpop.permute.xlu0 %567
      %569 = vrot.lane.b32.xlu0 %v478, 104
      %v570 = vpop.permute.xlu0 %569
      %571 = vrot.lane.b32.xlu0 %v479, 104
      %v572 = vpop.permute.xlu0 %571
      %573 = vrot.lane.b32.xlu0 %v480, 104
      %v574 = vpop.permute.xlu0 %573
      %575 = vrot.lane.b32.xlu0 %v481, 104
      %v576 = vpop.permute.xlu0 %575
      %577 = vrot.lane.b32.xlu0 %v482, 104
      %v578 = vpop.permute.xlu0 %577
      %579 = vrot.lane.b32.xlu0 %v483, 104
      %v580 = vpop.permute.xlu0 %579
      %581 = vrot.lane.b32.xlu0 %v484, 104
      %v582 = vpop.permute.xlu0 %581
      %s591 = scalar_lea.vmem %s325, 32
      %592 = vst.msk [vmem:[%s591] sm:$0xf] %vm493, %v568
      %593 = vst.msk [vmem:[%s591 + $0x4] sm:$0xf] %vm493, %v570
      %594 = vst.msk [vmem:[%s591 + $0x8] sm:$0xf] %vm493, %v572
      %595 = vst.msk [vmem:[%s591 + $0xc] sm:$0xf] %vm493, %v574
      %596 = vst.msk [vmem:[%s591 + $0x10] sm:$0xf] %vm493, %v576
      %597 = vst.msk [vmem:[%s591 + $0x14] sm:$0xf] %vm493, %v578
      %598 = vst.msk [vmem:[%s591 + $0x18] sm:$0xf] %vm493, %v580
      %599 = vst.msk [vmem:[%s591 + $0x1c] sm:$0xf] %vm493, %v582
      %v600 = vunpack.c.l.bf16 %v332
      %v601 = vunpack.c.l.bf16 %v333
      %v602 = vunpack.c.l.bf16 %v334
      %v603 = vunpack.c.l.bf16 %v335
      %v604 = vunpack.c.l.bf16 %v336
      %v605 = vunpack.c.l.bf16 %v337
      %v606 = vunpack.c.l.bf16 %v338
      %v607 = vunpack.c.l.bf16 %v339
      %v608 = vmul.f32 %v600, 0.25
      %v609 = vmul.f32 %v601, 0.25
      %v610 = vmul.f32 %v602, 0.25
      %v611 = vmul.f32 %v603, 0.25
      %v612 = vmul.f32 %v604, 0.25
      %v613 = vmul.f32 %v605, 0.25
      %v614 = vmul.f32 %v606, 0.25
      %v615 = vmul.f32 %v600, 0.75
      %v616 = vmul.f32 %v601, 0.75
      %v617 = vmul.f32 %v602, 0.75
      %v618 = vmul.f32 %v603, 0.75
      %v619 = vmul.f32 %v604, 0.75
      %v620 = vmul.f32 %v605, 0.75
      %v621 = vmul.f32 %v606, 0.75
      %v622 = vmul.f32 %v607, 0.75
      %v623 = vadd.f32 %v608, %v615
      %v624 = vadd.f32 %v608, %v616
      %v625 = vadd.f32 %v609, %v617
      %v626 = vadd.f32 %v610, %v618
      %v627 = vadd.f32 %v611, %v619
      %v628 = vadd.f32 %v612, %v620
      %v629 = vadd.f32 %v613, %v621
      %v630 = vadd.f32 %v614, %v622
      %v631 = vmul.f32 %v607, 0.25
      %v632 = vadd.f32 %v615, %v609
      %v633 = vadd.f32 %v616, %v610
      %v634 = vadd.f32 %v617, %v611
      %v635 = vadd.f32 %v618, %v612
      %v636 = vadd.f32 %v619, %v613
      %v637 = vadd.f32 %v620, %v614
      %v638 = vadd.f32 %v621, %v631
      %v639 = vadd.f32 %v622, %v631
      %v640 = vld [vmem:[%s1] sm:$0xff]
      %v641 = vld [vmem:[%s1 + $0x8] sm:$0xff]
      %v642 = vld [vmem:[%s1 + $0x10] sm:$0xff]
      %v643 = vld [vmem:[%s1 + $0x18] sm:$0xff]
      %v644 = vld [vmem:[%s1 + $0x20] sm:$0xff]
      %v645 = vld [vmem:[%s1 + $0x28] sm:$0xff]
      %v646 = vld [vmem:[%s1 + $0x30] sm:$0xff]
      %v647 = vld [vmem:[%s1 + $0x38] sm:$0xff]
      %s648 = scalar_lea.vmem %s1, 64
      %v649 = vld [vmem:[%s648] sm:$0xff]
      %v650 = vld [vmem:[%s648 + $0x8] sm:$0xff]
      %v651 = vld [vmem:[%s648 + $0x10] sm:$0xff]
      %v652 = vld [vmem:[%s648 + $0x18] sm:$0xff]
      %v653 = vld [vmem:[%s648 + $0x20] sm:$0xff]
      %v654 = vld [vmem:[%s648 + $0x28] sm:$0xff]
      %v655 = vld [vmem:[%s648 + $0x30] sm:$0xff]
      %v656 = vld [vmem:[%s648 + $0x38] sm:$0xff]
      %s657 = scalar_lea.vmem %s1, 128
      %v658 = vld [vmem:[%s657] sm:$0xff]
      %v659 = vld [vmem:[%s657 + $0x8] sm:$0xff]
      %v660 = vld [vmem:[%s657 + $0x10] sm:$0xff]
      %v661 = vld [vmem:[%s657 + $0x18] sm:$0xff]
      %v662 = vld [vmem:[%s657 + $0x20] sm:$0xff]
      %v663 = vld [vmem:[%s657 + $0x28] sm:$0xff]
      %v664 = vld [vmem:[%s657 + $0x30] sm:$0xff]
      %v665 = vld [vmem:[%s657 + $0x38] sm:$0xff]
      %s666 = scalar_lea.vmem %s1, 192
      %v667 = vld [vmem:[%s666] sm:$0xff]
      %v668 = vld [vmem:[%s666 + $0x8] sm:$0xff]
      %v669 = vld [vmem:[%s666 + $0x10] sm:$0xff]
      %v670 = vld [vmem:[%s666 + $0x18] sm:$0xff]
      %v671 = vld [vmem:[%s666 + $0x20] sm:$0xff]
      %v672 = vld [vmem:[%s666 + $0x28] sm:$0xff]
      %v673 = vld [vmem:[%s666 + $0x30] sm:$0xff]
      %v674 = vld [vmem:[%s666 + $0x38] sm:$0xff]
      %v675 = vld [vmem:[%s4] sm:$0xf]
      %v676 = vld [vmem:[%s4 + $0x4] sm:$0xf]
      %v677 = vld [vmem:[%s4 + $0x8] sm:$0xf]
      %v678 = vld [vmem:[%s4 + $0xc] sm:$0xf]
      %v679 = vrot.slane %v623, 7
      %v680 = vrot.slane %v624, 7
      %v681 = vrot.slane %v625, 7
      %v682 = vrot.slane %v626, 7
      %v683 = vrot.slane %v627, 7
      %v684 = vrot.slane %v628, 7
      %v685 = vrot.slane %v629, 7
      %v686 = vrot.slane %v630, 7
      %v687 = vlaneseq
      %v688 = vshrl.u32 %v687, 7
      %vm689 = vcmp.lt.s32.totalorder %v688, 1
      %v690 = vsel %vm689, %v685, %v686
      %v691 = vsel %vm689, %v684, %v685
      %v692 = vsel %vm689, %v683, %v684
      %v693 = vsel %vm689, %v682, %v683
      %v694 = vsel %vm689, %v681, %v682
      %v695 = vsel %vm689, %v680, %v681
      %v696 = vsel %vm689, %v679, %v680
      %v697 = vsel %vm689, %v686, %v679
      %v698 = vrot.slane %v623, 1
      %v699 = vrot.slane %v624, 1
      %v700 = vrot.slane %v625, 1
      %v701 = vrot.slane %v626, 1
      %v702 = vrot.slane %v627, 1
      %v703 = vrot.slane %v628, 1
      %v704 = vrot.slane %v629, 1
      %v705 = vrot.slane %v630, 1
      %vm706 = vcmp.lt.s32.totalorder %v688, 7
      %v707 = vsel %vm706, %v704, %v705
      %v708 = vsel %vm706, %v703, %v704
      %v709 = vsel %vm706, %v702, %v703
      %v710 = vsel %vm706, %v701, %v702
      %v711 = vsel %vm706, %v700, %v701
      %v712 = vsel %vm706, %v699, %v700
      %v713 = vsel %vm706, %v698, %v699
      %v714 = vsel %vm706, %v705, %v698
      %716 = vset.pattern.permute.xlu0 0
      %717 = vperm.xlu0 %716, %v640
      %v718 = vpop.permute.xlu0 %717
      %721 = vset.pattern.permute.xlu0 0
      %722 = vperm.xlu0 %721, %v641
      %v723 = vpop.permute.xlu0 %722
      %726 = vset.pattern.permute.xlu0 0
      %727 = vperm.xlu0 %726, %v642
      %v728 = vpop.permute.xlu0 %727
      %731 = vset.pattern.permute.xlu0 0
      %732 = vperm.xlu0 %731, %v643
      %v733 = vpop.permute.xlu0 %732
      %736 = vset.pattern.permute.xlu0 0
      %737 = vperm.xlu0 %736, %v644
      %v738 = vpop.permute.xlu0 %737
      %741 = vset.pattern.permute.xlu0 0
      %742 = vperm.xlu0 %741, %v645
      %v743 = vpop.permute.xlu0 %742
      %746 = vset.pattern.permute.xlu0 0
      %747 = vperm.xlu0 %746, %v646
      %v748 = vpop.permute.xlu0 %747
      %751 = vset.pattern.permute.xlu0 0
      %752 = vperm.xlu0 %751, %v647
      %v753 = vpop.permute.xlu0 %752
      %v755 = vmul.f32 %v718, %v697
      %v756 = vmul.f32 %v723, %v696
      %v757 = vmul.f32 %v728, %v695
      %v758 = vmul.f32 %v733, %v694
      %v759 = vmul.f32 %v738, %v693
      %v760 = vmul.f32 %v743, %v692
      %v761 = vmul.f32 %v748, %v691
      %v762 = vmul.f32 %v753, %v690
      %764 = vset.pattern.permute.xlu0 0
      %765 = vperm.xlu0 %764, %v649
      %v766 = vpop.permute.xlu0 %765
      %769 = vset.pattern.permute.xlu0 0
      %770 = vperm.xlu0 %769, %v650
      %v771 = vpop.permute.xlu0 %770
      %774 = vset.pattern.permute.xlu0 0
      %775 = vperm.xlu0 %774, %v651
      %v776 = vpop.permute.xlu0 %775
      %779 = vset.pattern.permute.xlu0 0
      %780 = vperm.xlu0 %779, %v652
      %v781 = vpop.permute.xlu0 %780
      %784 = vset.pattern.permute.xlu0 0
      %785 = vperm.xlu0 %784, %v653
      %v786 = vpop.permute.xlu0 %785
      %789 = vset.pattern.permute.xlu0 0
      %790 = vperm.xlu0 %789, %v654
      %v791 = vpop.permute.xlu0 %790
      %794 = vset.pattern.permute.xlu0 0
      %795 = vperm.xlu0 %794, %v655
      %v796 = vpop.permute.xlu0 %795
      %799 = vset.pattern.permute.xlu0 0
      %800 = vperm.xlu0 %799, %v656
      %v801 = vpop.permute.xlu0 %800
      %v803 = vmul.f32 %v766, %v623
      %v804 = vmul.f32 %v771, %v624
      %v805 = vmul.f32 %v776, %v625
      %v806 = vmul.f32 %v781, %v626
      %v807 = vmul.f32 %v786, %v627
      %v808 = vmul.f32 %v791, %v628
      %v809 = vmul.f32 %v796, %v629
      %v810 = vmul.f32 %v801, %v630
      %v811 = vadd.f32 %v755, %v803
      %v812 = vadd.f32 %v756, %v804
      %v813 = vadd.f32 %v757, %v805
      %v814 = vadd.f32 %v758, %v806
      %v815 = vadd.f32 %v759, %v807
      %v816 = vadd.f32 %v760, %v808
      %v817 = vadd.f32 %v761, %v809
      %v818 = vadd.f32 %v762, %v810
      %v819 = vpack.c.bf16 %v812, %v811
      %v820 = vpack.c.bf16 %v814, %v813
      %v821 = vpack.c.bf16 %v816, %v815
      %v822 = vpack.c.bf16 %v818, %v817
      %824 = vset.pattern.permute.xlu0 0
      %825 = vperm.xlu0 %824, %v667
      %v826 = vpop.permute.xlu0 %825
      %829 = vset.pattern.permute.xlu0 0
      %830 = vperm.xlu0 %829, %v668
      %v831 = vpop.permute.xlu0 %830
      %834 = vset.pattern.permute.xlu0 0
      %835 = vperm.xlu0 %834, %v669
      %v836 = vpop.permute.xlu0 %835
      %839 = vset.pattern.permute.xlu0 0
      %840 = vperm.xlu0 %839, %v670
      %v841 = vpop.permute.xlu0 %840
      %844 = vset.pattern.permute.xlu0 0
      %845 = vperm.xlu0 %844, %v671
      %v846 = vpop.permute.xlu0 %845
      %849 = vset.pattern.permute.xlu0 0
      %850 = vperm.xlu0 %849, %v672
      %v851 = vpop.permute.xlu0 %850
      %854 = vset.pattern.permute.xlu0 0
      %855 = vperm.xlu0 %854, %v673
      %v856 = vpop.permute.xlu0 %855
      %859 = vset.pattern.permute.xlu0 0
      %860 = vperm.xlu0 %859, %v674
      %v861 = vpop.permute.xlu0 %860
      %v863 = vmul.f32 %v826, %v623
      %v864 = vmul.f32 %v831, %v624
      %v865 = vmul.f32 %v836, %v625
      %v866 = vmul.f32 %v841, %v626
      %v867 = vmul.f32 %v846, %v627
      %v868 = vmul.f32 %v851, %v628
      %v869 = vmul.f32 %v856, %v629
      %v870 = vmul.f32 %v861, %v630
      %872 = vset.pattern.permute.xlu0 0
      %873 = vperm.xlu0 %872, %v658
      %v874 = vpop.permute.xlu0 %873
      %877 = vset.pattern.permute.xlu0 0
      %878 = vperm.xlu0 %877, %v659
      %v879 = vpop.permute.xlu0 %878
      %882 = vset.pattern.permute.xlu0 0
      %883 = vperm.xlu0 %882, %v660
      %v884 = vpop.permute.xlu0 %883
      %887 = vset.pattern.permute.xlu0 0
      %888 = vperm.xlu0 %887, %v661
      %v889 = vpop.permute.xlu0 %888
      %892 = vset.pattern.permute.xlu0 0
      %893 = vperm.xlu0 %892, %v662
      %v894 = vpop.permute.xlu0 %893
      %897 = vset.pattern.permute.xlu0 0
      %898 = vperm.xlu0 %897, %v663
      %v899 = vpop.permute.xlu0 %898
      %902 = vset.pattern.permute.xlu0 0
      %903 = vperm.xlu0 %902, %v664
      %v904 = vpop.permute.xlu0 %903
      %907 = vset.pattern.permute.xlu0 0
      %908 = vperm.xlu0 %907, %v665
      %v909 = vpop.permute.xlu0 %908
      %v911 = vmul.f32 %v874, %v713
      %v912 = vmul.f32 %v879, %v712
      %v913 = vmul.f32 %v884, %v711
      %v914 = vmul.f32 %v889, %v710
      %v915 = vmul.f32 %v894, %v709
      %v916 = vmul.f32 %v899, %v708
      %v917 = vmul.f32 %v904, %v707
      %v918 = vmul.f32 %v909, %v714
      %v919 = vadd.f32 %v863, %v911
      %v920 = vadd.f32 %v864, %v912
      %v921 = vadd.f32 %v865, %v913
      %v922 = vadd.f32 %v866, %v914
      %v923 = vadd.f32 %v867, %v915
      %v924 = vadd.f32 %v868, %v916
      %v925 = vadd.f32 %v869, %v917
      %v926 = vadd.f32 %v870, %v918
      %v927 = vpack.c.bf16 %v920, %v919
      %v928 = vpack.c.bf16 %v922, %v921
      %v929 = vpack.c.bf16 %v924, %v923
      %v930 = vpack.c.bf16 %v926, %v925
      %v931 = vld [vmem:[%s5] sm:$0x1]
      %v933 = vlaneseq
      %v934 = vshrl.u32 %v933, 7
      %v935 = vsub.s32 0, %v934
      %v936 = vrot.slane %v931, %v935
      %v942 = vunpack.c.l.b16 %v675
      %v943 = vunpack.c.l.b16 %v676
      %v944 = vunpack.c.l.b16 %v677
      %v945 = vunpack.c.l.b16 %v678
      %v946 = vpack.c.b16 %v943, %v942
      %v947 = vpack.c.b16 %v945, %v944
      %v951 = vsel %vm383, %v819, 0
      %v954 = vsel %vm383, %v820, 0
      %v957 = vsel %vm383, %v821, 0
      %v960 = vsel %vm383, %v822, 0
      %962 = vmatprep.subr.bf16.mxu0 0
      %963 = vmatpush1.bf16.msra.mxu0 0
      %964 = vmatprep.subr.bf16.mxu0 0
      %965 = vmatpush1.bf16.msra.mxu0 0
      %966 = vmatprep.subr.bf16.mxu0 0
      %967 = vmatpush1.bf16.msra.mxu0 0
      %968 = vmatprep.subr.bf16.mxu0 0
      %969 = vmatpush1.bf16.msra.mxu0 0
      %970 = vmatprep.subr.bf16.mxu0 0
      %971 = vmatpush1.bf16.msra.mxu0 0
      %972 = vmatprep.subr.bf16.mxu0 0
      %973 = vmatpush1.bf16.msra.mxu0 0
      %974 = vmatprep.subr.bf16.mxu0 0
      %975 = vmatpush1.bf16.msra.mxu0 %v947
      %976 = vmatprep.subr.bf16.mxu0 0
      %977 = vmatpush1.bf16.msra.mxu0 %v946
      %978 = vmatprep.subr.bf16.mxu0 0
      %979 = vmatpush2.bf16.msra.mxu0 0
      %980 = vmatprep.subr.bf16.mxu0 0
      %981 = vmatpush2.bf16.msra.mxu0 0
      %982 = vmatprep.subr.bf16.mxu0 0
      %983 = vmatpush2.bf16.msra.mxu0 0
      %984 = vmatprep.subr.bf16.mxu0 0
      %985 = vmatpush2.bf16.msra.mxu0 0
      %986 = vmatprep.subr.bf16.mxu0 0
      %987 = vmatpush2.bf16.msra.mxu0 0
      %988 = vmatprep.subr.bf16.mxu0 0
      %989 = vmatpush2.bf16.msra.mxu0 0
      %990 = vmatprep.subr.bf16.mxu0 0
      %991 = vmatpush2.bf16.msra.mxu0 0
      %992 = vmatprep.subr.bf16.mxu0 0
      %993 = vmatpush2.bf16.msra.mxu0 0
      %994 = vmatprep.mubr.bf16.mxu0 0
      %995 = vmatmul.mubr.bf16.gmra.mxu0 %v951
      %v996 = vpop.f32.mrf.mxu0
      %v997 = vadd.f32 %v936, %v996
      %v998 = vpop.f32.mrf.mxu0
      %v999 = vpop.f32.mrf.mxu0
      %v1000 = vadd.f32 %v936, %v999
      %v1001 = vpop.f32.mrf.mxu0
      %1002 = vmatprep.mubr.bf16.mxu0 0
      %1003 = vmatmul.mubr.bf16.gmra.mxu0 %v954
      %v1004 = vpop.f32.mrf.mxu0
      %v1005 = vadd.f32 %v936, %v1004
      %v1006 = vpop.f32.mrf.mxu0
      %v1007 = vpop.f32.mrf.mxu0
      %v1008 = vadd.f32 %v936, %v1007
      %v1009 = vpop.f32.mrf.mxu0
      %1010 = vmatprep.mubr.bf16.mxu0 0
      %1011 = vmatmul.mubr.bf16.gmra.mxu0 %v957
      %v1012 = vpop.f32.mrf.mxu0
      %v1013 = vadd.f32 %v936, %v1012
      %v1014 = vpop.f32.mrf.mxu0
      %v1015 = vpop.f32.mrf.mxu0
      %v1016 = vadd.f32 %v936, %v1015
      %v1017 = vpop.f32.mrf.mxu0
      %1018 = vmatprep.mubr.bf16.mxu0 0
      %1019 = vmatmul.mubr.bf16.gmra.mxu0 %v960
      %v1020 = vpop.f32.mrf.mxu0
      %v1021 = vadd.f32 %v936, %v1020
      %v1022 = vpop.f32.mrf.mxu0
      %v1023 = vpop.f32.mrf.mxu0
      %v1024 = vadd.f32 %v936, %v1023
      %v1025 = vpop.f32.mrf.mxu0
      %1026 = vdwg.mxu0
      %v1027 = vpack.c.bf16 %v1000, %v997
      %v1028 = vpack.c.bf16 %v1008, %v1005
      %v1029 = vpack.c.bf16 %v1016, %v1013
      %v1030 = vpack.c.bf16 %v1024, %v1021
      %v1035 = vunpack.c.l.b16 %v1027
      %v1036 = vunpack.c.h.b16 %v1027
      %v1037 = vunpack.c.l.b16 %v1028
      %v1038 = vunpack.c.h.b16 %v1028
      %v1039 = vunpack.c.l.b16 %v1029
      %v1040 = vunpack.c.h.b16 %v1029
      %v1041 = vunpack.c.l.b16 %v1030
      %v1042 = vunpack.c.h.b16 %v1030
      %v1043 = vpack.c.b16 %v1035, %v1035
      %v1044 = vpack.c.b16 %v1036, %v1036
      %v1045 = vpack.c.b16 %v1037, %v1037
      %v1046 = vpack.c.b16 %v1038, %v1038
      %v1047 = vpack.c.b16 %v1039, %v1039
      %v1048 = vpack.c.b16 %v1040, %v1040
      %v1049 = vpack.c.b16 %v1041, %v1041
      %v1050 = vpack.c.b16 %v1042, %v1042
      %vm1059 = vcmask 125952
      %1060 = vst.msk [vmem:[%s330] sm:$0xf] %vm1059, %v1043
      %1061 = vst.msk [vmem:[%s330 + $0x4] sm:$0xf] %vm1059, %v1044
      %1062 = vst.msk [vmem:[%s330 + $0x8] sm:$0xf] %vm1059, %v1045
      %1063 = vst.msk [vmem:[%s330 + $0xc] sm:$0xf] %vm1059, %v1046
      %1064 = vst.msk [vmem:[%s330 + $0x10] sm:$0xf] %vm1059, %v1047
      %1065 = vst.msk [vmem:[%s330 + $0x14] sm:$0xf] %vm1059, %v1048
      %1066 = vst.msk [vmem:[%s330 + $0x18] sm:$0xf] %vm1059, %v1049
      %1067 = vst.msk [vmem:[%s330 + $0x1c] sm:$0xf] %vm1059, %v1050
      %v1068 = vld [vmem:[%s5] sm:$0x1]
      %v1070 = vlaneseq
      %v1071 = vshrl.u32 %v1070, 7
      %v1072 = vsub.s32 0, %v1071
      %v1073 = vrot.slane %v1068, %v1072
      %v1076 = vsel %vm383, %v927, 0
      %v1079 = vsel %vm383, %v928, 0
      %v1082 = vsel %vm383, %v929, 0
      %v1085 = vsel %vm383, %v930, 0
      %1087 = vmatprep.subr.bf16.mxu0 0
      %1088 = vmatpush1.bf16.msra.mxu0 0
      %1089 = vmatprep.subr.bf16.mxu0 0
      %1090 = vmatpush1.bf16.msra.mxu0 0
      %1091 = vmatprep.subr.bf16.mxu0 0
      %1092 = vmatpush1.bf16.msra.mxu0 0
      %1093 = vmatprep.subr.bf16.mxu0 0
      %1094 = vmatpush1.bf16.msra.mxu0 0
      %1095 = vmatprep.subr.bf16.mxu0 0
      %1096 = vmatpush1.bf16.msra.mxu0 0
      %1097 = vmatprep.subr.bf16.mxu0 0
      %1098 = vmatpush1.bf16.msra.mxu0 0
      %1099 = vmatprep.subr.bf16.mxu0 0
      %1100 = vmatpush1.bf16.msra.mxu0 %v947
      %1101 = vmatprep.subr.bf16.mxu0 0
      %1102 = vmatpush1.bf16.msra.mxu0 %v946
      %1103 = vmatprep.subr.bf16.mxu0 0
      %1104 = vmatpush2.bf16.msra.mxu0 0
      %1105 = vmatprep.subr.bf16.mxu0 0
      %1106 = vmatpush2.bf16.msra.mxu0 0
      %1107 = vmatprep.subr.bf16.mxu0 0
      %1108 = vmatpush2.bf16.msra.mxu0 0
      %1109 = vmatprep.subr.bf16.mxu0 0
      %1110 = vmatpush2.bf16.msra.mxu0 0
      %1111 = vmatprep.subr.bf16.mxu0 0
      %1112 = vmatpush2.bf16.msra.mxu0 0
      %1113 = vmatprep.subr.bf16.mxu0 0
      %1114 = vmatpush2.bf16.msra.mxu0 0
      %1115 = vmatprep.subr.bf16.mxu0 0
      %1116 = vmatpush2.bf16.msra.mxu0 0
      %1117 = vmatprep.subr.bf16.mxu0 0
      %1118 = vmatpush2.bf16.msra.mxu0 0
      %1119 = vmatprep.mubr.bf16.mxu0 0
      %1120 = vmatmul.mubr.bf16.gmra.mxu0 %v1076
      %v1121 = vpop.f32.mrf.mxu0
      %v1122 = vadd.f32 %v1073, %v1121
      %v1123 = vpop.f32.mrf.mxu0
      %v1124 = vpop.f32.mrf.mxu0
      %v1125 = vadd.f32 %v1073, %v1124
      %v1126 = vpop.f32.mrf.mxu0
      %1127 = vmatprep.mubr.bf16.mxu0 0
      %1128 = vmatmul.mubr.bf16.gmra.mxu0 %v1079
      %v1129 = vpop.f32.mrf.mxu0
      %v1130 = vadd.f32 %v1073, %v1129
      %v1131 = vpop.f32.mrf.mxu0
      %v1132 = vpop.f32.mrf.mxu0
      %v1133 = vadd.f32 %v1073, %v1132
      %v1134 = vpop.f32.mrf.mxu0
      %1135 = vmatprep.mubr.bf16.mxu0 0
      %1136 = vmatmul.mubr.bf16.gmra.mxu0 %v1082
      %v1137 = vpop.f32.mrf.mxu0
      %v1138 = vadd.f32 %v1073, %v1137
      %v1139 = vpop.f32.mrf.mxu0
      %v1140 = vpop.f32.mrf.mxu0
      %v1141 = vadd.f32 %v1073, %v1140
      %v1142 = vpop.f32.mrf.mxu0
      %1143 = vmatprep.mubr.bf16.mxu0 0
      %1144 = vmatmul.mubr.bf16.gmra.mxu0 %v1085
      %v1145 = vpop.f32.mrf.mxu0
      %v1146 = vadd.f32 %v1073, %v1145
      %v1147 = vpop.f32.mrf.mxu0
      %v1148 = vpop.f32.mrf.mxu0
      %v1149 = vadd.f32 %v1073, %v1148
      %v1150 = vpop.f32.mrf.mxu0
      %1151 = vdwg.mxu0
      %v1152 = vpack.c.bf16 %v1125, %v1122
      %v1153 = vpack.c.bf16 %v1133, %v1130
      %v1154 = vpack.c.bf16 %v1141, %v1138
      %v1155 = vpack.c.bf16 %v1149, %v1146
      %v1160 = vunpack.c.l.b16 %v1152
      %v1161 = vunpack.c.h.b16 %v1152
      %v1162 = vunpack.c.l.b16 %v1153
      %v1163 = vunpack.c.h.b16 %v1153
      %v1164 = vunpack.c.l.b16 %v1154
      %v1165 = vunpack.c.h.b16 %v1154
      %v1166 = vunpack.c.l.b16 %v1155
      %v1167 = vunpack.c.h.b16 %v1155
      %v1168 = vpack.c.b16 %v1160, %v1160
      %v1169 = vpack.c.b16 %v1161, %v1161
      %v1170 = vpack.c.b16 %v1162, %v1162
      %v1171 = vpack.c.b16 %v1163, %v1163
      %v1172 = vpack.c.b16 %v1164, %v1164
      %v1173 = vpack.c.b16 %v1165, %v1165
      %v1174 = vpack.c.b16 %v1166, %v1166
      %v1175 = vpack.c.b16 %v1167, %v1167
      %s1184 = scalar_lea.vmem %s330, 32
      %1185 = vst.msk [vmem:[%s1184] sm:$0xf] %vm1059, %v1168
      %1186 = vst.msk [vmem:[%s1184 + $0x4] sm:$0xf] %vm1059, %v1169
      %1187 = vst.msk [vmem:[%s1184 + $0x8] sm:$0xf] %vm1059, %v1170
      %1188 = vst.msk [vmem:[%s1184 + $0xc] sm:$0xf] %vm1059, %v1171
      %1189 = vst.msk [vmem:[%s1184 + $0x10] sm:$0xf] %vm1059, %v1172
      %1190 = vst.msk [vmem:[%s1184 + $0x14] sm:$0xf] %vm1059, %v1173
      %1191 = vst.msk [vmem:[%s1184 + $0x18] sm:$0xf] %vm1059, %v1174
      %1192 = vst.msk [vmem:[%s1184 + $0x1c] sm:$0xf] %vm1059, %v1175
      %v1193 = vrot.slane %v632, 7
      %v1194 = vrot.slane %v633, 7
      %v1195 = vrot.slane %v634, 7
      %v1196 = vrot.slane %v635, 7
      %v1197 = vrot.slane %v636, 7
      %v1198 = vrot.slane %v637, 7
      %v1199 = vrot.slane %v638, 7
      %v1200 = vrot.slane %v639, 7
      %v1201 = vsel %vm689, %v1199, %v1200
      %v1202 = vsel %vm689, %v1198, %v1199
      %v1203 = vsel %vm689, %v1197, %v1198
      %v1204 = vsel %vm689, %v1196, %v1197
      %v1205 = vsel %vm689, %v1195, %v1196
      %v1206 = vsel %vm689, %v1194, %v1195
      %v1207 = vsel %vm689, %v1193, %v1194
      %v1208 = vsel %vm689, %v1200, %v1193
      %v1209 = vrot.slane %v632, 1
      %v1210 = vrot.slane %v633, 1
      %v1211 = vrot.slane %v634, 1
      %v1212 = vrot.slane %v635, 1
      %v1213 = vrot.slane %v636, 1
      %v1214 = vrot.slane %v637, 1
      %v1215 = vrot.slane %v638, 1
      %v1216 = vrot.slane %v639, 1
      %v1217 = vsel %vm706, %v1215, %v1216
      %v1218 = vsel %vm706, %v1214, %v1215
      %v1219 = vsel %vm706, %v1213, %v1214
      %v1220 = vsel %vm706, %v1212, %v1213
      %v1221 = vsel %vm706, %v1211, %v1212
      %v1222 = vsel %vm706, %v1210, %v1211
      %v1223 = vsel %vm706, %v1209, %v1210
      %v1224 = vsel %vm706, %v1216, %v1209
      %v1225 = vmul.f32 %v718, %v1208
      %v1226 = vmul.f32 %v723, %v1207
      %v1227 = vmul.f32 %v728, %v1206
      %v1228 = vmul.f32 %v733, %v1205
      %v1229 = vmul.f32 %v738, %v1204
      %v1230 = vmul.f32 %v743, %v1203
      %v1231 = vmul.f32 %v748, %v1202
      %v1232 = vmul.f32 %v753, %v1201
      %v1233 = vmul.f32 %v766, %v632
      %v1234 = vmul.f32 %v771, %v633
      %v1235 = vmul.f32 %v776, %v634
      %v1236 = vmul.f32 %v781, %v635
      %v1237 = vmul.f32 %v786, %v636
      %v1238 = vmul.f32 %v791, %v637
      %v1239 = vmul.f32 %v796, %v638
      %v1240 = vmul.f32 %v801, %v639
      %v1241 = vadd.f32 %v1225, %v1233
      %v1242 = vadd.f32 %v1226, %v1234
      %v1243 = vadd.f32 %v1227, %v1235
      %v1244 = vadd.f32 %v1228, %v1236
      %v1245 = vadd.f32 %v1229, %v1237
      %v1246 = vadd.f32 %v1230, %v1238
      %v1247 = vadd.f32 %v1231, %v1239
      %v1248 = vadd.f32 %v1232, %v1240
      %v1249 = vpack.c.bf16 %v1242, %v1241
      %v1250 = vpack.c.bf16 %v1244, %v1243
      %v1251 = vpack.c.bf16 %v1246, %v1245
      %v1252 = vpack.c.bf16 %v1248, %v1247
      %v1253 = vmul.f32 %v826, %v632
      %v1254 = vmul.f32 %v831, %v633
      %v1255 = vmul.f32 %v836, %v634
      %v1256 = vmul.f32 %v841, %v635
      %v1257 = vmul.f32 %v846, %v636
      %v1258 = vmul.f32 %v851, %v637
      %v1259 = vmul.f32 %v856, %v638
      %v1260 = vmul.f32 %v861, %v639
      %v1261 = vmul.f32 %v874, %v1223
      %v1262 = vmul.f32 %v879, %v1222
      %v1263 = vmul.f32 %v884, %v1221
      %v1264 = vmul.f32 %v889, %v1220
      %v1265 = vmul.f32 %v894, %v1219
      %v1266 = vmul.f32 %v899, %v1218
      %v1267 = vmul.f32 %v904, %v1217
      %v1268 = vmul.f32 %v909, %v1224
      %v1269 = vadd.f32 %v1253, %v1261
      %v1270 = vadd.f32 %v1254, %v1262
      %v1271 = vadd.f32 %v1255, %v1263
      %v1272 = vadd.f32 %v1256, %v1264
      %v1273 = vadd.f32 %v1257, %v1265
      %v1274 = vadd.f32 %v1258, %v1266
      %v1275 = vadd.f32 %v1259, %v1267
      %v1276 = vadd.f32 %v1260, %v1268
      %v1277 = vpack.c.bf16 %v1270, %v1269
      %v1278 = vpack.c.bf16 %v1272, %v1271
      %v1279 = vpack.c.bf16 %v1274, %v1273
      %v1280 = vpack.c.bf16 %v1276, %v1275
      %v1281 = vld [vmem:[%s5] sm:$0x1]
      %v1283 = vlaneseq
      %v1284 = vshrl.u32 %v1283, 7
      %v1285 = vsub.s32 0, %v1284
      %v1286 = vrot.slane %v1281, %v1285
      %v1289 = vsel %vm383, %v1249, 0
      %v1292 = vsel %vm383, %v1250, 0
      %v1295 = vsel %vm383, %v1251, 0
      %v1298 = vsel %vm383, %v1252, 0
      %1300 = vmatprep.subr.bf16.mxu0 0
      %1301 = vmatpush1.bf16.msra.mxu0 0
      %1302 = vmatprep.subr.bf16.mxu0 0
      %1303 = vmatpush1.bf16.msra.mxu0 0
      %1304 = vmatprep.subr.bf16.mxu0 0
      %1305 = vmatpush1.bf16.msra.mxu0 0
      %1306 = vmatprep.subr.bf16.mxu0 0
      %1307 = vmatpush1.bf16.msra.mxu0 0
      %1308 = vmatprep.subr.bf16.mxu0 0
      %1309 = vmatpush1.bf16.msra.mxu0 0
      %1310 = vmatprep.subr.bf16.mxu0 0
      %1311 = vmatpush1.bf16.msra.mxu0 0
      %1312 = vmatprep.subr.bf16.mxu0 0
      %1313 = vmatpush1.bf16.msra.mxu0 %v947
      %1314 = vmatprep.subr.bf16.mxu0 0
      %1315 = vmatpush1.bf16.msra.mxu0 %v946
      %1316 = vmatprep.subr.bf16.mxu0 0
      %1317 = vmatpush2.bf16.msra.mxu0 0
      %1318 = vmatprep.subr.bf16.mxu0 0
      %1319 = vmatpush2.bf16.msra.mxu0 0
      %1320 = vmatprep.subr.bf16.mxu0 0
      %1321 = vmatpush2.bf16.msra.mxu0 0
      %1322 = vmatprep.subr.bf16.mxu0 0
      %1323 = vmatpush2.bf16.msra.mxu0 0
      %1324 = vmatprep.subr.bf16.mxu0 0
      %1325 = vmatpush2.bf16.msra.mxu0 0
      %1326 = vmatprep.subr.bf16.mxu0 0
      %1327 = vmatpush2.bf16.msra.mxu0 0
      %1328 = vmatprep.subr.bf16.mxu0 0
      %1329 = vmatpush2.bf16.msra.mxu0 0
      %1330 = vmatprep.subr.bf16.mxu0 0
      %1331 = vmatpush2.bf16.msra.mxu0 0
      %1332 = vmatprep.mubr.bf16.mxu0 0
      %1333 = vmatmul.mubr.bf16.gmra.mxu0 %v1289
      %v1334 = vpop.f32.mrf.mxu0
      %v1335 = vadd.f32 %v1286, %v1334
      %v1336 = vpop.f32.mrf.mxu0
      %v1337 = vpop.f32.mrf.mxu0
      %v1338 = vadd.f32 %v1286, %v1337
      %v1339 = vpop.f32.mrf.mxu0
      %1340 = vmatprep.mubr.bf16.mxu0 0
      %1341 = vmatmul.mubr.bf16.gmra.mxu0 %v1292
      %v1342 = vpop.f32.mrf.mxu0
      %v1343 = vadd.f32 %v1286, %v1342
      %v1344 = vpop.f32.mrf.mxu0
      %v1345 = vpop.f32.mrf.mxu0
      %v1346 = vadd.f32 %v1286, %v1345
      %v1347 = vpop.f32.mrf.mxu0
      %1348 = vmatprep.mubr.bf16.mxu0 0
      %1349 = vmatmul.mubr.bf16.gmra.mxu0 %v1295
      %v1350 = vpop.f32.mrf.mxu0
      %v1351 = vadd.f32 %v1286, %v1350
      %v1352 = vpop.f32.mrf.mxu0
      %v1353 = vpop.f32.mrf.mxu0
      %v1354 = vadd.f32 %v1286, %v1353
      %v1355 = vpop.f32.mrf.mxu0
      %1356 = vmatprep.mubr.bf16.mxu0 0
      %1357 = vmatmul.mubr.bf16.gmra.mxu0 %v1298
      %v1358 = vpop.f32.mrf.mxu0
      %v1359 = vadd.f32 %v1286, %v1358
      %v1360 = vpop.f32.mrf.mxu0
      %v1361 = vpop.f32.mrf.mxu0
      %v1362 = vadd.f32 %v1286, %v1361
      %v1363 = vpop.f32.mrf.mxu0
      %1364 = vdwg.mxu0
      %v1365 = vpack.c.bf16 %v1338, %v1335
      %v1366 = vpack.c.bf16 %v1346, %v1343
      %v1367 = vpack.c.bf16 %v1354, %v1351
      %v1368 = vpack.c.bf16 %v1362, %v1359
      %v1373 = vunpack.c.l.b16 %v1365
      %v1374 = vunpack.c.h.b16 %v1365
      %v1375 = vunpack.c.l.b16 %v1366
      %v1376 = vunpack.c.h.b16 %v1366
      %v1377 = vunpack.c.l.b16 %v1367
      %v1378 = vunpack.c.h.b16 %v1367
      %v1379 = vunpack.c.l.b16 %v1368
      %v1380 = vunpack.c.h.b16 %v1368
      %v1381 = vpack.c.b16 %v1373, %v1373
      %v1382 = vpack.c.b16 %v1374, %v1374
      %v1383 = vpack.c.b16 %v1375, %v1375
      %v1384 = vpack.c.b16 %v1376, %v1376
      %v1385 = vpack.c.b16 %v1377, %v1377
      %v1386 = vpack.c.b16 %v1378, %v1378
      %v1387 = vpack.c.b16 %v1379, %v1379
      %v1388 = vpack.c.b16 %v1380, %v1380
      %s1397 = scalar_lea.vmem %s330, 64
      %1398 = vst.msk [vmem:[%s1397] sm:$0xf] %vm1059, %v1381
      %1399 = vst.msk [vmem:[%s1397 + $0x4] sm:$0xf] %vm1059, %v1382
      %1400 = vst.msk [vmem:[%s1397 + $0x8] sm:$0xf] %vm1059, %v1383
      %1401 = vst.msk [vmem:[%s1397 + $0xc] sm:$0xf] %vm1059, %v1384
      %1402 = vst.msk [vmem:[%s1397 + $0x10] sm:$0xf] %vm1059, %v1385
      %1403 = vst.msk [vmem:[%s1397 + $0x14] sm:$0xf] %vm1059, %v1386
      %1404 = vst.msk [vmem:[%s1397 + $0x18] sm:$0xf] %vm1059, %v1387
      %1405 = vst.msk [vmem:[%s1397 + $0x1c] sm:$0xf] %vm1059, %v1388
      %v1406 = vld [vmem:[%s5] sm:$0x1]
      %v1408 = vlaneseq
      %v1409 = vshrl.u32 %v1408, 7
      %v1410 = vsub.s32 0, %v1409
      %v1411 = vrot.slane %v1406, %v1410
      %v1414 = vsel %vm383, %v1277, 0
      %v1417 = vsel %vm383, %v1278, 0
      %v1420 = vsel %vm383, %v1279, 0
      %v1423 = vsel %vm383, %v1280, 0
      %1425 = vmatprep.subr.bf16.mxu0 0
      %1426 = vmatpush1.bf16.msra.mxu0 0
      %1427 = vmatprep.subr.bf16.mxu0 0
      %1428 = vmatpush1.bf16.msra.mxu0 0
      %1429 = vmatprep.subr.bf16.mxu0 0
      %1430 = vmatpush1.bf16.msra.mxu0 0
      %1431 = vmatprep.subr.bf16.mxu0 0
      %1432 = vmatpush1.bf16.msra.mxu0 0
      %1433 = vmatprep.subr.bf16.mxu0 0
      %1434 = vmatpush1.bf16.msra.mxu0 0
      %1435 = vmatprep.subr.bf16.mxu0 0
      %1436 = vmatpush1.bf16.msra.mxu0 0
      %1437 = vmatprep.subr.bf16.mxu0 0
      %1438 = vmatpush1.bf16.msra.mxu0 %v947
      %1439 = vmatprep.subr.bf16.mxu0 0
      %1440 = vmatpush1.bf16.msra.mxu0 %v946
      %1441 = vmatprep.subr.bf16.mxu0 0
      %1442 = vmatpush2.bf16.msra.mxu0 0
      %1443 = vmatprep.subr.bf16.mxu0 0
      %1444 = vmatpush2.bf16.msra.mxu0 0
      %1445 = vmatprep.subr.bf16.mxu0 0
      %1446 = vmatpush2.bf16.msra.mxu0 0
      %1447 = vmatprep.subr.bf16.mxu0 0
      %1448 = vmatpush2.bf16.msra.mxu0 0
      %1449 = vmatprep.subr.bf16.mxu0 0
      %1450 = vmatpush2.bf16.msra.mxu0 0
      %1451 = vmatprep.subr.bf16.mxu0 0
      %1452 = vmatpush2.bf16.msra.mxu0 0
      %1453 = vmatprep.subr.bf16.mxu0 0
      %1454 = vmatpush2.bf16.msra.mxu0 0
      %1455 = vmatprep.subr.bf16.mxu0 0
      %1456 = vmatpush2.bf16.msra.mxu0 0
      %1457 = vmatprep.mubr.bf16.mxu0 0
      %1458 = vmatmul.mubr.bf16.gmra.mxu0 %v1414
      %v1459 = vpop.f32.mrf.mxu0
      %v1460 = vadd.f32 %v1411, %v1459
      %v1461 = vpop.f32.mrf.mxu0
      %v1462 = vpop.f32.mrf.mxu0
      %v1463 = vadd.f32 %v1411, %v1462
      %v1464 = vpop.f32.mrf.mxu0
      %1465 = vmatprep.mubr.bf16.mxu0 0
      %1466 = vmatmul.mubr.bf16.gmra.mxu0 %v1417
      %v1467 = vpop.f32.mrf.mxu0
      %v1468 = vadd.f32 %v1411, %v1467
      %v1469 = vpop.f32.mrf.mxu0
      %v1470 = vpop.f32.mrf.mxu0
      %v1471 = vadd.f32 %v1411, %v1470
      %v1472 = vpop.f32.mrf.mxu0
      %1473 = vmatprep.mubr.bf16.mxu0 0
      %1474 = vmatmul.mubr.bf16.gmra.mxu0 %v1420
      %v1475 = vpop.f32.mrf.mxu0
      %v1476 = vadd.f32 %v1411, %v1475
      %v1477 = vpop.f32.mrf.mxu0
      %v1478 = vpop.f32.mrf.mxu0
      %v1479 = vadd.f32 %v1411, %v1478
      %v1480 = vpop.f32.mrf.mxu0
      %1481 = vmatprep.mubr.bf16.mxu0 0
      %1482 = vmatmul.mubr.bf16.gmra.mxu0 %v1423
      %v1483 = vpop.f32.mrf.mxu0
      %v1484 = vadd.f32 %v1411, %v1483
      %v1485 = vpop.f32.mrf.mxu0
      %v1486 = vpop.f32.mrf.mxu0
      %v1487 = vadd.f32 %v1411, %v1486
      %v1488 = vpop.f32.mrf.mxu0
      %1489 = vdwg.mxu0
      %v1490 = vpack.c.bf16 %v1463, %v1460
      %v1491 = vpack.c.bf16 %v1471, %v1468
      %v1492 = vpack.c.bf16 %v1479, %v1476
      %v1493 = vpack.c.bf16 %v1487, %v1484
      %v1498 = vunpack.c.l.b16 %v1490
      %v1499 = vunpack.c.h.b16 %v1490
      %v1500 = vunpack.c.l.b16 %v1491
      %v1501 = vunpack.c.h.b16 %v1491
      %v1502 = vunpack.c.l.b16 %v1492
      %v1503 = vunpack.c.h.b16 %v1492
      %v1504 = vunpack.c.l.b16 %v1493
      %v1505 = vunpack.c.h.b16 %v1493
      %v1506 = vpack.c.b16 %v1498, %v1498
      %v1507 = vpack.c.b16 %v1499, %v1499
      %v1508 = vpack.c.b16 %v1500, %v1500
      %v1509 = vpack.c.b16 %v1501, %v1501
      %v1510 = vpack.c.b16 %v1502, %v1502
      %v1511 = vpack.c.b16 %v1503, %v1503
      %v1512 = vpack.c.b16 %v1504, %v1504
      %v1513 = vpack.c.b16 %v1505, %v1505
      %s1522 = scalar_lea.vmem %s330, 96
      %1523 = vst.msk [vmem:[%s1522] sm:$0xf] %vm1059, %v1506
      %1524 = vst.msk [vmem:[%s1522 + $0x4] sm:$0xf] %vm1059, %v1507
      %1525 = vst.msk [vmem:[%s1522 + $0x8] sm:$0xf] %vm1059, %v1508
      %1526 = vst.msk [vmem:[%s1522 + $0xc] sm:$0xf] %vm1059, %v1509
      %1527 = vst.msk [vmem:[%s1522 + $0x10] sm:$0xf] %vm1059, %v1510
      %1528 = vst.msk [vmem:[%s1522 + $0x14] sm:$0xf] %vm1059, %v1511
      %1529 = vst.msk [vmem:[%s1522 + $0x18] sm:$0xf] %vm1059, %v1512
      %1530 = vst.msk [vmem:[%s1522 + $0x1c] sm:$0xf] %vm1059, %v1513
      %p1531 = scmp.lt.s32.totalorder %s20, 1
      %s1532 = scalar_select %p1531, %s20, 1
      %s1533 = smul.addr %s1532, 16
      %s1534 = smul.addr %s1533, 4
      %s1535 = scalar_lea.vmem %s6, %s1534
      %p1536 = scmp.lt.s32.totalorder %s20, 1
      %s1537 = scalar_select %p1536, %s20, 1
      %s1538 = smul.addr %s1537, 16
      %s1539 = smul.addr %s1538, 4
      %s1540 = scalar_lea.vmem %s7, %s1539
      %p1541 = scmp.lt.s32.totalorder %s20, 1
      %s1542 = scalar_select %p1541, %s20, 1
      %s1543 = smul.addr %s1542, 32
      %s1544 = smul.addr %s1543, 4
      %s1545 = scalar_lea.vmem %s8, %s1544
      // Predicated region
      $region45: #{tpu_custom_call.1} parent=43 // pred_check
        %p1546 = pneg %p169
      $region46: #{tpu_custom_call.1} parent=43 // pred_check_branch
        %1548 = sbr.rel (%p1546) target = $region48
      $region47: #{tpu_custom_call.1} parent=43 // pred_region
        _
      $region48: #{tpu_custom_call.1} parent=43 // pred_fallthru
        _
      // Predicated region
      $region49: #{tpu_custom_call.1} parent=43 // pred_check
        %p1549 = pneg %p195
      $region50: #{tpu_custom_call.1} parent=43 // pred_check_branch
        %1551 = sbr.rel (%p1549) target = $region52
      $region51: #{tpu_custom_call.1} parent=43 // pred_region
        _
      $region52: #{tpu_custom_call.1} parent=43 // pred_fallthru
        _
      // Predicated region
      $region53: #{tpu_custom_call.1} parent=43 // pred_check
        %p1552 = pneg %p221
      $region54: #{tpu_custom_call.1} parent=43 // pred_check_branch
        %1554 = sbr.rel (%p1552) target = $region56
      $region55: #{tpu_custom_call.1} parent=43 // pred_region
        _
      $region56: #{tpu_custom_call.1} parent=43 // pred_fallthru
        _
    $region44: #{tpu_custom_call.1} parent=5 // pred_fallthru
      _
    %p1555 = scmp.le.s32.totalorder 2, %s15
    // Predicated region
    $region57: #{tpu_custom_call.1} parent=5 // pred_check
      %p1556 = pneg %p1555
    $region58: #{tpu_custom_call.1} parent=5 // pred_check_branch
      %1558 = sbr.rel (%p1556) target = $region60
    $region59: #{tpu_custom_call.1} parent=5 // pred_region
      %s1559 = ssub.s32 %s15, 2
      // Predicated region
      $region61: #{tpu_custom_call.1} parent=59 // pred_check
        %p1560 = pneg %p175
      $region62: #{tpu_custom_call.1} parent=59 // pred_check_branch
        %1562 = sbr.rel (%p1560) target = $region64
      $region63: #{tpu_custom_call.1} parent=59 // pred_region
        %p1563 = scmp.lt.s32.totalorder %s21, 1
        %s1564 = scalar_select %p1563, %s21, 1
        %s1565 = smul.addr %s1564, 16
        %s1566 = smul.addr %s1565, 4
        %s1567 = scalar_lea.vmem %s6, %s1566
      $region64: #{tpu_custom_call.1} parent=59 // pred_fallthru
        _
      // Predicated region
      $region65: #{tpu_custom_call.1} parent=59 // pred_check
        %p1568 = pneg %p201
      $region66: #{tpu_custom_call.1} parent=59 // pred_check_branch
        %1570 = sbr.rel (%p1568) target = $region68
      $region67: #{tpu_custom_call.1} parent=59 // pred_region
        %p1571 = scmp.lt.s32.totalorder %s21, 1
        %s1572 = scalar_select %p1571, %s21, 1
        %s1573 = smul.addr %s1572, 16
        %s1574 = smul.addr %s1573, 4
        %s1575 = scalar_lea.vmem %s7, %s1574
      $region68: #{tpu_custom_call.1} parent=59 // pred_fallthru
        _
      // Predicated region
      $region69: #{tpu_custom_call.1} parent=59 // pred_check
        %p1576 = pneg %p227
      $region70: #{tpu_custom_call.1} parent=59 // pred_check_branch
        %1578 = sbr.rel (%p1576) target = $region72
      $region71: #{tpu_custom_call.1} parent=59 // pred_region
        %p1579 = scmp.lt.s32.totalorder %s21, 1
        %s1580 = scalar_select %p1579, %s21, 1
        %s1581 = smul.addr %s1580, 32
        %s1582 = smul.addr %s1581, 4
        %s1583 = scalar_lea.vmem %s8, %s1582
      $region72: #{tpu_custom_call.1} parent=59 // pred_fallthru
        _
    $region60: #{tpu_custom_call.1} parent=5 // pred_fallthru
      _
  $region6: #{tpu_custom_call.1} parent=0 // loop_footer
    %s19 = sadd.s32 1, %s15
  $region7: #{tpu_custom_call.1} parent=0 // loop_footer_branch
    %14 = sbr.rel target = $region3
  $region8: #{tpu_custom_call.1} parent=0 // loop_exit
    _

</llo_original>
